<compile_context>
chip_gen: v5e
topology: v5e:2x2
jax: 0.10.0
libtpu: 0.0.40
codegen_flags: <defaults>
</compile_context>

<pallas_src>
import math
import functools

import jax
import jax.numpy as jnp
from jax import lax
from jax.experimental import pallas as pl
from jax.experimental.pallas import tpu as pltpu

GN_EPS = 1e-5
NUM_GROUPS = 32
N_HEADS = 1


# --------------------------------------------------------------------------
# Pass 1: GroupNorm scale/shift per (batch, channel)
# --------------------------------------------------------------------------
def _gn_scale_shift_kernel(x_ref, gamma_ref, beta_ref, m_ref, ss_ref, acc_ref,
                           *, hw, num_groups):
    """grid = (B, num_spatial_tiles).

    x_ref  : (1, ts, C) spatial tile of token-major input
    m_ref  : (C, G)     channel->group one-hot
    ss_ref : (1, 2, C)  output: row0 = scale (inv_std*gamma), row1 = shift
    acc_ref: (2, C)     scratch: running [sum; sum_sq]
    """
    ti = pl.program_id(1)
    nt = pl.num_programs(1)
    x = x_ref[0].astype(jnp.float32)                     # (ts, C)
    C = x.shape[1]

    @pl.when(ti == 0)
    def _init():
        acc_ref[...] = jnp.zeros_like(acc_ref)

    part = jnp.concatenate(
        [jnp.sum(x, axis=0, keepdims=True),
         jnp.sum(x * x, axis=0, keepdims=True)], axis=0)  # (2, C)
    acc_ref[...] += part

    @pl.when(ti == nt - 1)
    def _finalize():
        M = m_ref[...].astype(jnp.float32)                # (C, G)
        cg = C // num_groups
        inv_n = 1.0 / float(hw * cg)
        # one 2-row matmul for both group sums
        # NOTE: E[x^2]-E[x]^2 in f32; acceptable for activation-scale data.
        g = jnp.dot(acc_ref[...], M, preferred_element_type=jnp.float32)  # (2,G)
        mean_g = g[0:1, :] * inv_n
        var_g = jnp.maximum(g[1:2, :] * inv_n - mean_g * mean_g, 0.0)
        inv_g = lax.rsqrt(var_g + GN_EPS)
        stats_g = jnp.concatenate([mean_g, inv_g], axis=0)               # (2,G)
        # broadcast back to channels: contract the G axes directly (no M.T)
        stats_c = lax.dot_general(stats_g, M, (((1,), (1,)), ((), ())),
                                  preferred_element_type=jnp.float32)    # (2,C)
        scale_c = stats_c[1:2, :] * gamma_ref[...]
        shift_c = beta_ref[...] - stats_c[0:1, :] * scale_c
        ss_ref[0] = jnp.concatenate([scale_c, shift_c], axis=0)


# --------------------------------------------------------------------------
# Pass 2: normalize once per spatial tile and project K / V to bf16 HBM
# --------------------------------------------------------------------------
def _kv_project_kernel(x_ref, ss_ref, wk_ref, wv_ref, bk_ref, bv_ref,
                       k_out_ref, v_out_ref):
    """grid = (B, num_spatial_tiles)."""
    ss = ss_ref[0]                                        # (2, C)
    scale = ss[0:1, :]
    shift = ss[1:2, :]
    x = x_ref[0].astype(jnp.float32)                      # (ts, C)
    xn = (x * scale + shift).astype(jnp.bfloat16)
    k = jnp.dot(xn, wk_ref[...], preferred_element_type=jnp.float32) + bk_ref[...]
    v = jnp.dot(xn, wv_ref[...], preferred_element_type=jnp.float32) + bv_ref[...]
    k_out_ref[0] = k.astype(k_out_ref.dtype)
    v_out_ref[0] = v.astype(v_out_ref.dtype)


# --------------------------------------------------------------------------
# Pass 3: flash-style single-head attention + out projection + residual
# --------------------------------------------------------------------------
def _flash_attn_kernel(xq_ref, k_ref, v_ref, ss_ref,
                       wq_ref, bq_ref, wo_ref, bo_ref, o_ref,
                       q_s, m_s, l_s, acc_s,
                       *, sm_scale, block_k, kv_resident, approx_recip):
    """grid = (B, num_q_tiles, num_kv_tiles); KV axis is the reduction axis.

    xq_ref : (1, tq, C)  f32 query tile (also the residual)
    k_ref  : (HW, C) bf16 (resident) or (tk, C) bf16 (tiled)
    v_ref  : same layout as k_ref
    ss_ref : (1, 2, C)   GroupNorm scale/shift for this batch element
    q_s    : (tq, C) bf16 scratch (scaled queries)
    m_s,l_s: (tq, 1) f32 running max / running sum
    acc_s  : (tq, C) f32 output accumulator
    """
    ki = pl.program_id(2)
    nk = pl.num_programs(2)
    ss = ss_ref[0]                      # (2, C)
    scale = ss[0:1, :]
    shift = ss[1:2, :]

    @pl.when(ki == 0)
    def _init():
        xq = xq_ref[0].astype(jnp.float32)
        xnq = (xq * scale + shift).astype(jnp.bfloat16)
        q = jnp.dot(xnq, wq_ref[...], preferred_element_type=jnp.float32)
        q = (q + bq_ref[...]) * sm_scale
        q_s[...] = q.astype(jnp.bfloat16)
        m_s[...] = jnp.full(m_s.shape, -jnp.inf, dtype=m_s.dtype)
        l_s[...] = jnp.zeros_like(l_s)
        acc_s[...] = jnp.zeros_like(acc_s)

    if kv_resident:
        start = pl.multiple_of(ki * block_k, block_k)
        k = k_ref[pl.ds(start, block_k), :]
        v = v_ref[pl.ds(start, block_k), :]
    else:
        k = k_ref[...]
        v = v_ref[...]

    # scores via nt-matmul (no explicit k transpose)
    s = lax.dot_general(q_s[...], k, (((1,), (1,)), ((), ())),
                        preferred_element_type=jnp.float32)      # (tq, tk)

    # online softmax update
    m_prev = m_s[...]
    m_new = jnp.maximum(m_prev, jnp.max(s, axis=-1, keepdims=True))
    alpha = jnp.exp(m_prev - m_new)
    p = jnp.exp(s - m_new)
    l_s[...] = alpha * l_s[...] + jnp.sum(p, axis=-1, keepdims=True)
    acc_s[...] = alpha * acc_s[...] + jnp.dot(
        p.astype(jnp.bfloat16), v, preferred_element_type=jnp.float32)
    m_s[...] = m_new

    @pl.when(ki == nk - 1)
    def _finalize():
        if approx_recip:
            inv_l = pl.reciprocal(l_s[...], approx=True)
        else:
            inv_l = 1.0 / l_s[...]
        out = acc_s[...] * inv_l                                   # (tq, C)
        y = jnp.dot(out.astype(jnp.bfloat16), wo_ref[...],
                    preferred_element_type=jnp.float32) + bo_ref[...]
        o_ref[0] = (y + xq_ref[0].astype(jnp.float32)).astype(o_ref.dtype)


# --------------------------------------------------------------------------
# Wrapper
# --------------------------------------------------------------------------
def _pick_tile(hw, target):
    # NOTE: falls back to the full spatial extent when no multiple-of-8 divisor
    # exists; fine for typical power-of-two feature maps.
    if hw <= target:
        return hw
    for t in range(target, 7, -1):
        if hw % t == 0 and t % 8 == 0:
            return t
    return hw


def _vmem_cap_bytes():
    """75% of physical VMEM (leaves headroom for compiler scratch); 48 MiB
    fallback which is safe on every generation (v7x has 64 MiB)."""
    try:
        return int(pltpu.get_tpu_info().vmem_capacity_bytes) * 3 // 4
    except Exception:
        return 48 << 20


def _attn_vmem_budget(tq, tk, hw, C, kv_resident, cap):
    f32, b16 = 4, 2
    x_blocks = 2 * (2 * tq * C * f32)                      # xq in + out (dbl-buf)
    if kv_resident:
        kv_blocks = 2 * (2 * hw * C * b16)                 # K + V resident (dbl-buf)
    else:
        kv_blocks = 2 * (2 * tk * C * b16)
    weights = 2 * (2 * C * C * b16 + 2 * C * f32 + 2 * C * f32)
    scratch = tq * C * (b16 + f32) + 2 * tq * f32
    interim = 3 * tq * tk * f32 + tq * C * f32
    total = x_blocks + kv_blocks + weights + scratch + interim
    return min(max(32 << 20, int(total * 1.5)), cap)


def self_attention_block(x_nchw, params, *, block_q=None, block_kv=None,
                         block_stats=None, block_proj=None, approx_recip=True):
    """x_nchw: (B, C, H, W) float32 -> same shape/dtype."""
    B, C, H, W = x_nchw.shape
    HW = H * W
    G = NUM_GROUPS
    assert C % G == 0, "GroupNorm(32, C) requires C % 32 == 0"
    gamma, beta, wq, wk, wv, bq, bk, bv, wo, bo = params

    # NCHW -> (B, HW, C)  (matches x.view(b,c,h*w).transpose(-1,-2))
    x_tok = jnp.transpose(x_nchw.reshape(B, C, HW), (0, 2, 1))

    # channel -> group one-hot (structural constant)
    M = jax.nn.one_hot(jnp.arange(C) // (C // G), G, dtype=jnp.float32)  # (C, G)

    wq_b, wk_b, wv_b, wo_b = (w.astype(jnp.bfloat16) for w in (wq, wk, wv, wo))
    vmem_cap = _vmem_cap_bytes()

    # ---- pass 1: GroupNorm scale/shift per (batch, channel) ----
    ts = block_stats or _pick_tile(HW, 1024)
    nt = HW // ts
    ss = pl.pallas_call(
        functools.partial(_gn_scale_shift_kernel, hw=HW, num_groups=G),
        out_shape=jax.ShapeDtypeStruct((B, 2, C), jnp.float32),
        grid_spec=pltpu.PrefetchScalarGridSpec(
            num_scalar_prefetch=0,
            grid=(B, nt),
            in_specs=[
                pl.BlockSpec((1, ts, C), lambda b, t: (b, t, 0)),
                pl.BlockSpec((1, C), lambda b, t: (0, 0)),
                pl.BlockSpec((1, C), lambda b, t: (0, 0)),
                pl.BlockSpec((C, G), lambda b, t: (0, 0)),
            ],
            out_specs=pl.BlockSpec((1, 2, C), lambda b, t: (b, 0, 0)),
            scratch_shapes=[pltpu.VMEM((2, C), jnp.float32)],
        ),
        compiler_params=pltpu.CompilerParams(
            dimension_semantics=("parallel", "arbitrary")),
    )(x_tok, gamma, beta, M)

    # ---- pass 2: project K / V once, store bf16 (halves pass-3 HBM reads) ----
    tp = block_proj or _pick_tile(HW, 512)
    ntp = HW // tp
    k_all, v_all = pl.pallas_call(
        _kv_project_kernel,
        out_shape=(jax.ShapeDtypeStruct((B, HW, C), jnp.bfloat16),
                   jax.ShapeDtypeStruct((B, HW, C), jnp.bfloat16)),
        grid_spec=pltpu.PrefetchScalarGridSpec(
            num_scalar_prefetch=0,
            grid=(B, ntp),
            in_specs=[
                pl.BlockSpec((1, tp, C), lambda b, t: (b, t, 0)),   # x
                pl.BlockSpec((1, 2, C), lambda b, t: (b, 0, 0)),    # scale/shift
                pl.BlockSpec((C, C), lambda b, t: (0, 0)),          # Wk
                pl.BlockSpec((C, C), lambda b, t: (0, 0)),          # Wv
                pl.BlockSpec((1, C), lambda b, t: (0, 0)),          # bk
                pl.BlockSpec((1, C), lambda b, t: (0, 0)),          # bv
            ],
            out_specs=[pl.BlockSpec((1, tp, C), lambda b, t: (b, t, 0)),
                       pl.BlockSpec((1, tp, C), lambda b, t: (b, t, 0))],
        ),
        compiler_params=pltpu.CompilerParams(
            dimension_semantics=("parallel", "parallel")),
    )(x_tok, ss, wk_b, wv_b, bk, bv)

    # ---- pass 3: flash attention over KV tiles + out proj + residual ----
    tq = block_q or _pick_tile(HW, 256)
    tk = block_kv or _pick_tile(HW, 512)
    nq, nk = HW // tq, HW // tk
    sm_scale = 1.0 / math.sqrt(float(C // N_HEADS))

    # Keep K/V VMEM-resident per batch element when the (double-buffered) bf16
    # footprint fits; otherwise stream bf16 tiles (v7x / very large HW).
    kv_resident = (2 * 2 * HW * C * 2) <= (vmem_cap // 2)
    if kv_resident:
        k_spec = pl.BlockSpec((None, HW, C), lambda b, qi, ki: (b, 0, 0))
        v_spec = pl.BlockSpec((None, HW, C), lambda b, qi, ki: (b, 0, 0))
    else:
        k_spec = pl.BlockSpec((None, tk, C), lambda b, qi, ki: (b, ki, 0))
        v_spec = pl.BlockSpec((None, tk, C), lambda b, qi, ki: (b, ki, 0))

    out_tok = pl.pallas_call(
        functools.partial(_flash_attn_kernel, sm_scale=sm_scale, block_k=tk,
                          kv_resident=kv_resident, approx_recip=approx_recip),
        out_shape=jax.ShapeDtypeStruct((B, HW, C), x_nchw.dtype),
        grid_spec=pltpu.PrefetchScalarGridSpec(
            num_scalar_prefetch=0,
            grid=(B, nq, nk),
            in_specs=[
                pl.BlockSpec((1, tq, C), lambda b, qi, ki: (b, qi, 0)),  # x (q / residual)
                k_spec,                                                  # K (bf16)
                v_spec,                                                  # V (bf16)
                pl.BlockSpec((1, 2, C), lambda b, qi, ki: (b, 0, 0)),    # scale/shift
                pl.BlockSpec((C, C), lambda b, qi, ki: (0, 0)),          # Wq
                pl.BlockSpec((1, C), lambda b, qi, ki: (0, 0)),          # bq
                pl.BlockSpec((C, C), lambda b, qi, ki: (0, 0)),          # Wo
                pl.BlockSpec((1, C), lambda b, qi, ki: (0, 0)),          # bo
            ],
            out_specs=pl.BlockSpec((1, tq, C), lambda b, qi, ki: (b, qi, 0)),
            scratch_shapes=[
                pltpu.VMEM((tq, C), jnp.bfloat16),   # scaled q
                pltpu.VMEM((tq, 1), jnp.float32),    # running max
                pltpu.VMEM((tq, 1), jnp.float32),    # running sum
                pltpu.VMEM((tq, C), jnp.float32),    # output accumulator
            ],
        ),
        compiler_params=pltpu.CompilerParams(
            dimension_semantics=("parallel", "parallel", "arbitrary"),
            vmem_limit_bytes=_attn_vmem_budget(tq, tk, HW, C, kv_resident,
                                               vmem_cap)),
    )(x_tok, k_all, v_all, ss, wq_b, bq, wo_b, bo)

    # (B, HW, C) -> NCHW  (matches .transpose(-1,-2).view(b,c,h,w))
    return jnp.transpose(out_tok, (0, 2, 1)).reshape(B, C, H, W)


# --------------------------------------------------------------------------
# Parameters & pure-JAX reference
# --------------------------------------------------------------------------
def make_params(key, C):
    ks = jax.random.split(key, 10)
    gamma = (1.0 + 0.1 * jax.random.normal(ks[0], (1, C))).astype(jnp.float32)
    beta = (0.1 * jax.random.normal(ks[1], (1, C))).astype(jnp.float32)
    wq = (0.05 * jax.random.normal(ks[2], (C, C))).astype(jnp.float32)
    wk = (0.05 * jax.random.normal(ks[3], (C, C))).astype(jnp.float32)
    wv = (0.05 * jax.random.normal(ks[4], (C, C))).astype(jnp.float32)
    bq = (0.05 * jax.random.normal(ks[5], (1, C))).astype(jnp.float32)
    bk = (0.05 * jax.random.normal(ks[6], (1, C))).astype(jnp.float32)
    bv = (0.05 * jax.random.normal(ks[7], (1, C))).astype(jnp.float32)
    wo = (0.05 * jax.random.normal(ks[8], (C, C))).astype(jnp.float32)
    bo = (0.05 * jax.random.normal(ks[9], (1, C))).astype(jnp.float32)
    return gamma, beta, wq, wk, wv, bq, bk, bv, wo, bo


def _reference(x_nchw, params):
    gamma, beta, wq, wk, wv, bq, bk, bv, wo, bo = params
    B, C, H, W = x_nchw.shape
    G = NUM_GROUPS
    Cg = C // G
    xg = x_nchw.reshape(B, G, Cg, H, W)
    mean = jnp.mean(xg, axis=(2, 3, 4), keepdims=True)
    var = jnp.mean((xg - mean) ** 2, axis=(2, 3, 4), keepdims=True)
    xn = ((xg - mean) / jnp.sqrt(var + GN_EPS)).reshape(B, C, H, W)
    xn = xn * gamma.reshape(1, C, 1, 1) + beta.reshape(1, C, 1, 1)
    t = jnp.transpose(xn.reshape(B, C, H * W), (0, 2, 1))       # (B, HW, C)
    q = t @ wq + bq
    k = t @ wk + bk
    v = t @ wv + bv
    scores = (q @ jnp.swapaxes(k, -1, -2)) / math.sqrt(C // N_HEADS)
    p = jax.nn.softmax(scores, axis=-1)
    y = (p @ v) @ wo + bo
    y = jnp.transpose(y, (0, 2, 1)).reshape(B, C, H, W)
    return y + x_nchw


if __name__ == "__main__":
    # C must be a multiple of 32 (GroupNorm); 128 keeps the lane axis dense.
    # (Real model uses C=512, HW up to 4096; defaults tq=256/tk=512 target that.)
    B, C, H, W = 2, 128, 8, 8
    key = jax.random.PRNGKey(0)
    kx, kp = jax.random.split(key)
    x = jax.random.normal(kx, (B, C, H, W), dtype=jnp.float32)
    params = make_params(kp, C)

    # block_q/block_kv = 32 so the flash KV/Q tiling is exercised (HW = 64).
    fn = jax.jit(functools.partial(self_attention_block, params=params,
                                   block_q=32, block_kv=32))
    out = fn(x)
    jax.block_until_ready(out)

    ref = _reference(x, params)
    assert out.shape == ref.shape
    err = float(jnp.max(jnp.abs(out - ref)))
    # bf16 MXU operands with f32 accumulation: allow ~1e-2 absolute error.
    assert err < 2e-2, f"mismatch vs reference: max abs err {err}"
    print("KERNEL_OK")
</pallas_src>

<mosaic_0001>
module attributes {stable_mosaic.version = 11 : i64} {
  func.func @_kv_project_kernel(%arg0: i32, %arg1: i32, %arg2: memref<1x64x128xf32, #tpu.memory_space<vmem>>, %arg3: memref<1x2x128xf32, #tpu.memory_space<vmem>>, %arg4: memref<128x128xbf16, #tpu.memory_space<vmem>>, %arg5: memref<128x128xbf16, #tpu.memory_space<vmem>>, %arg6: memref<1x128xf32, #tpu.memory_space<vmem>>, %arg7: memref<1x128xf32, #tpu.memory_space<vmem>>, %arg8: memref<1x64x128xbf16, #tpu.memory_space<vmem>>, %arg9: memref<1x64x128xbf16, #tpu.memory_space<vmem>>) attributes {dimension_semantics = [#tpu.dimension_semantics<parallel>, #tpu.dimension_semantics<parallel>], iteration_bounds = array<i64: 2, 1>, scalar_prefetch = 0 : i64, scratch_operands = 0 : i64, tpu.core_type = #tpu.core_type<tc>, window_params = [{transform_indices = @transform_0, window_bounds = array<i64: 1, 64, 128>}, {transform_indices = @transform_1, window_bounds = array<i64: 1, 2, 128>}, {pipeline_mode = #tpu.pipeline_mode<synchronous>, transform_indices = @transform_2, window_bounds = array<i64: 128, 128>}, {pipeline_mode = #tpu.pipeline_mode<synchronous>, transform_indices = @transform_3, window_bounds = array<i64: 128, 128>}, {pipeline_mode = #tpu.pipeline_mode<synchronous>, transform_indices = @transform_4, window_bounds = array<i64: 1, 128>}, {pipeline_mode = #tpu.pipeline_mode<synchronous>, transform_indices = @transform_5, window_bounds = array<i64: 1, 128>}, {transform_indices = @transform_6, window_bounds = array<i64: 1, 64, 128>}, {transform_indices = @transform_7, window_bounds = array<i64: 1, 64, 128>}]} {
    %c0 = arith.constant 0 : index
    %c0_0 = arith.constant 0 : index
    %c0_1 = arith.constant 0 : index
    %0 = vector.load %arg3[%c0, %c0_0, %c0_1] : memref<1x2x128xf32, #tpu.memory_space<vmem>>, vector<1x2x128xf32>
    %1 = vector.shape_cast %0 : vector<1x2x128xf32> to vector<2x128xf32>
    %2 = vector.extract_strided_slice %1 {offsets = [0, 0], sizes = [1, 128], strides = [1, 1]} : vector<2x128xf32> to vector<1x128xf32>
    %3 = vector.extract_strided_slice %1 {offsets = [1, 0], sizes = [1, 128], strides = [1, 1]} : vector<2x128xf32> to vector<1x128xf32>
    %c0_2 = arith.constant 0 : index
    %c0_3 = arith.constant 0 : index
    %c0_4 = arith.constant 0 : index
    %4 = vector.load %arg2[%c0_2, %c0_3, %c0_4] : memref<1x64x128xf32, #tpu.memory_space<vmem>>, vector<1x64x128xf32>
    %5 = vector.shape_cast %4 : vector<1x64x128xf32> to vector<64x128xf32>
    %6 = vector.broadcast %2 : vector<1x128xf32> to vector<64x128xf32>
    %7 = arith.mulf %5, %6 : vector<64x128xf32>
    %8 = vector.broadcast %3 : vector<1x128xf32> to vector<64x128xf32>
    %9 = arith.addf %7, %8 : vector<64x128xf32>
    %10 = arith.truncf %9 : vector<64x128xf32> to vector<64x128xbf16>
    %c0_5 = arith.constant 0 : index
    %c0_6 = arith.constant 0 : index
    %11 = vector.load %arg4[%c0_5, %c0_6] : memref<128x128xbf16, #tpu.memory_space<vmem>>, vector<128x128xbf16>
    %cst = arith.constant dense<0.000000e+00> : vector<64x128xf32>
    %12 = tpu.matmul %10, %11, %cst {dimension_numbers = #tpu.dot_dimension_numbers<[1], [0], [0], [1], [0, 0, 1, 1], [], []>} : vector<64x128xbf16>, vector<128x128xbf16>, vector<64x128xf32> -> vector<64x128xf32>
    %c0_7 = arith.constant 0 : index
    %c0_8 = arith.constant 0 : index
    %13 = vector.load %arg6[%c0_7, %c0_8] : memref<1x128xf32, #tpu.memory_space<vmem>>, vector<1x128xf32>
    %14 = vector.broadcast %13 : vector<1x128xf32> to vector<64x128xf32>
    %15 = arith.addf %12, %14 : vector<64x128xf32>
    %c0_9 = arith.constant 0 : index
    %c0_10 = arith.constant 0 : index
    %16 = vector.load %arg5[%c0_9, %c0_10] : memref<128x128xbf16, #tpu.memory_space<vmem>>, vector<128x128xbf16>
    %cst_11 = arith.constant dense<0.000000e+00> : vector<64x128xf32>
    %17 = tpu.matmul %10, %16, %cst_11 {dimension_numbers = #tpu.dot_dimension_numbers<[1], [0], [0], [1], [0, 0, 1, 1], [], []>} : vector<64x128xbf16>, vector<128x128xbf16>, vector<64x128xf32> -> vector<64x128xf32>
    %c0_12 = arith.constant 0 : index
    %c0_13 = arith.constant 0 : index
    %18 = vector.load %arg7[%c0_12, %c0_13] : memref<1x128xf32, #tpu.memory_space<vmem>>, vector<1x128xf32>
    %19 = vector.broadcast %18 : vector<1x128xf32> to vector<64x128xf32>
    %20 = arith.addf %17, %19 : vector<64x128xf32>
    %21 = arith.truncf %15 : vector<64x128xf32> to vector<64x128xbf16>
    %c0_14 = arith.constant 0 : index
    %c0_15 = arith.constant 0 : index
    %c0_16 = arith.constant 0 : index
    %22 = vector.load %arg8[%c0_14, %c0_15, %c0_16] : memref<1x64x128xbf16, #tpu.memory_space<vmem>>, vector<1x64x128xbf16>
    %23 = vector.shape_cast %22 : vector<1x64x128xbf16> to vector<64x128xbf16>
    %24 = vector.shape_cast %21 : vector<64x128xbf16> to vector<1x64x128xbf16>
    tpu.vector_store %arg8[%c0_14, %c0_15, %c0_16], %24 {strides = array<i32>} : memref<1x64x128xbf16, #tpu.memory_space<vmem>>, vector<1x64x128xbf16>,
    %25 = arith.truncf %20 : vector<64x128xf32> to vector<64x128xbf16>
    %c0_17 = arith.constant 0 : index
    %c0_18 = arith.constant 0 : index
    %c0_19 = arith.constant 0 : index
    %26 = vector.load %arg9[%c0_17, %c0_18, %c0_19] : memref<1x64x128xbf16, #tpu.memory_space<vmem>>, vector<1x64x128xbf16>
    %27 = vector.shape_cast %26 : vector<1x64x128xbf16> to vector<64x128xbf16>
    %28 = vector.shape_cast %25 : vector<64x128xbf16> to vector<1x64x128xbf16>
    tpu.vector_store %arg9[%c0_17, %c0_18, %c0_19], %28 {strides = array<i32>} : memref<1x64x128xbf16, #tpu.memory_space<vmem>>, vector<1x64x128xbf16>,
    return
  }
  func.func @transform_0(%arg0: i32, %arg1: i32) -> (i32, i32, i32) {
    %c0_i32 = arith.constant 0 : i32
    %c0_i32_0 = arith.constant 0 : i32
    return %arg0, %arg1, %c0_i32 : i32, i32, i32
  }
  func.func @transform_1(%arg0: i32, %arg1: i32) -> (i32, i32, i32) {
    %c0_i32 = arith.constant 0 : i32
    %c0_i32_0 = arith.constant 0 : i32
    %c0_i32_1 = arith.constant 0 : i32
    return %arg0, %c0_i32, %c0_i32_0 : i32, i32, i32
  }
  func.func @transform_2(%arg0: i32, %arg1: i32) -> (i32, i32) {
    %c0_i32 = arith.constant 0 : i32
    %c0_i32_0 = arith.constant 0 : i32
    %c0_i32_1 = arith.constant 0 : i32
    return %c0_i32, %c0_i32_0 : i32, i32
  }
  func.func @transform_3(%arg0: i32, %arg1: i32) -> (i32, i32) {
    %c0_i32 = arith.constant 0 : i32
    %c0_i32_0 = arith.constant 0 : i32
    %c0_i32_1 = arith.constant 0 : i32
    return %c0_i32, %c0_i32_0 : i32, i32
  }
  func.func @transform_4(%arg0: i32, %arg1: i32) -> (i32, i32) {
    %c0_i32 = arith.constant 0 : i32
    %c0_i32_0 = arith.constant 0 : i32
    %c0_i32_1 = arith.constant 0 : i32
    return %c0_i32, %c0_i32_0 : i32, i32
  }
  func.func @transform_5(%arg0: i32, %arg1: i32) -> (i32, i32) {
    %c0_i32 = arith.constant 0 : i32
    %c0_i32_0 = arith.constant 0 : i32
    %c0_i32_1 = arith.constant 0 : i32
    return %c0_i32, %c0_i32_0 : i32, i32
  }
  func.func @transform_6(%arg0: i32, %arg1: i32) -> (i32, i32, i32) {
    %c0_i32 = arith.constant 0 : i32
    %c0_i32_0 = arith.constant 0 : i32
    return %arg0, %arg1, %c0_i32 : i32, i32, i32
  }
  func.func @transform_7(%arg0: i32, %arg1: i32) -> (i32, i32, i32) {
    %c0_i32 = arith.constant 0 : i32
    %c0_i32_0 = arith.constant 0 : i32
    return %arg0, %arg1, %c0_i32 : i32, i32, i32
  }
}

module attributes {stable_mosaic.version = 11 : i64} {
  func.func @_gn_scale_shift_kernel(%arg0: i32, %arg1: i32, %arg2: memref<1x64x128xf32, #tpu.memory_space<vmem>>, %arg3: memref<1x128xf32, #tpu.memory_space<vmem>>, %arg4: memref<1x128xf32, #tpu.memory_space<vmem>>, %arg5: memref<128x32xf32, #tpu.memory_space<vmem>>, %arg6: memref<1x2x128xf32, #tpu.memory_space<vmem>>, %arg7: memref<2x128xf32, #tpu.memory_space<vmem>>) attributes {dimension_semantics = [#tpu.dimension_semantics<parallel>, #tpu.dimension_semantics<arbitrary>], iteration_bounds = array<i64: 2, 1>, scalar_prefetch = 0 : i64, scratch_operands = 1 : i64, tpu.core_type = #tpu.core_type<tc>, window_params = [{transform_indices = @transform_0, window_bounds = array<i64: 1, 64, 128>}, {pipeline_mode = #tpu.pipeline_mode<synchronous>, transform_indices = @transform_1, window_bounds = array<i64: 1, 128>}, {pipeline_mode = #tpu.pipeline_mode<synchronous>, transform_indices = @transform_2, window_bounds = array<i64: 1, 128>}, {pipeline_mode = #tpu.pipeline_mode<synchronous>, transform_indices = @transform_3, window_bounds = array<i64: 128, 32>}, {transform_indices = @transform_4, window_bounds = array<i64: 1, 2, 128>}]} {
    %c0 = arith.constant 0 : index
    %c0_0 = arith.constant 0 : index
    %c0_1 = arith.constant 0 : index
    %0 = vector.load %arg2[%c0, %c0_0, %c0_1] : memref<1x64x128xf32, #tpu.memory_space<vmem>>, vector<1x64x128xf32>
    %1 = vector.shape_cast %0 : vector<1x64x128xf32> to vector<64x128xf32>
    %c0_i32 = arith.constant 0 : i32
    %2 = arith.cmpi eq, %arg1, %c0_i32 : i32
    %3 = arith.extui %2 : i1 to i32
    %c0_i32_2 = arith.constant 0 : i32
    %4 = arith.cmpi ne, %3, %c0_i32_2 : i32
    scf.if %4 {
      %cst_10 = arith.constant 0.000000e+00 : f32
      %17 = vector.broadcast %cst_10 : f32 to vector<2x128xf32>
      %c0_11 = arith.constant 0 : index
      %c0_12 = arith.constant 0 : index
      %18 = vector.load %arg7[%c0_11, %c0_12] : memref<2x128xf32, #tpu.memory_space<vmem>>, vector<2x128xf32>
      tpu.vector_store %arg7[%c0_11, %c0_12], %17 {strides = array<i32>} : memref<2x128xf32, #tpu.memory_space<vmem>>, vector<2x128xf32>,
    } else {
    }
    %cst = arith.constant dense<0.000000e+00> : vector<128xf32>
    %5 = vector.multi_reduction <add>, %1, %cst [0] : vector<64x128xf32> to vector<128xf32>
    %6 = vector.shape_cast %5 : vector<128xf32> to vector<1x128xf32>
    %7 = arith.mulf %1, %1 : vector<64x128xf32>
    %cst_3 = arith.constant dense<0.000000e+00> : vector<128xf32>
    %8 = vector.multi_reduction <add>, %7, %cst_3 [0] : vector<64x128xf32> to vector<128xf32>
    %9 = vector.shape_cast %8 : vector<128xf32> to vector<1x128xf32>
    %10 = tpu.concatenate %6, %9 in 0 : vector<1x128xf32>, vector<1x128xf32> -> vector<2x128xf32>
    %c0_4 = arith.constant 0 : index
    %c0_5 = arith.constant 0 : index
    %11 = vector.load %arg7[%c0_4, %c0_5] : memref<2x128xf32, #tpu.memory_space<vmem>>, vector<2x128xf32>
    %12 = arith.addf %11, %10 : vector<2x128xf32>
    %c0_6 = arith.constant 0 : index
    %c0_7 = arith.constant 0 : index
    %13 = vector.load %arg7[%c0_6, %c0_7] : memref<2x128xf32, #tpu.memory_space<vmem>>, vector<2x128xf32>
    tpu.vector_store %arg7[%c0_6, %c0_7], %12 {strides = array<i32>} : memref<2x128xf32, #tpu.memory_space<vmem>>, vector<2x128xf32>,
    %c0_i32_8 = arith.constant 0 : i32
    %14 = arith.cmpi eq, %arg1, %c0_i32_8 : i32
    %15 = arith.extui %14 : i1 to i32
    %c0_i32_9 = arith.constant 0 : i32
    %16 = arith.cmpi ne, %15, %c0_i32_9 : i32
    scf.if %16 {
      %c0_10 = arith.constant 0 : index
      %c0_11 = arith.constant 0 : index
      %17 = vector.load %arg5[%c0_10, %c0_11] : memref<128x32xf32, #tpu.memory_space<vmem>>, vector<128x32xf32>
      %c0_12 = arith.constant 0 : index
      %c0_13 = arith.constant 0 : index
      %18 = vector.load %arg7[%c0_12, %c0_13] : memref<2x128xf32, #tpu.memory_space<vmem>>, vector<2x128xf32>
      %cst_14 = arith.constant dense<0.000000e+00> : vector<2x32xf32>
      %19 = tpu.matmul %18, %17, %cst_14 {dimension_numbers = #tpu.dot_dimension_numbers<[1], [0], [0], [1], [0, 0, 1, 1], [], []>} : vector<2x128xf32>, vector<128x32xf32>, vector<2x32xf32> -> vector<2x32xf32>
      %20 = vector.extract_strided_slice %19 {offsets = [0, 0], sizes = [1, 32], strides = [1, 1]} : vector<2x32xf32> to vector<1x32xf32>
      %cst_15 = arith.constant 3.906250e-03 : f32
      %21 = vector.broadcast %cst_15 : f32 to vector<1x32xf32>
      %22 = arith.mulf %20, %21 : vector<1x32xf32>
      %23 = vector.extract_strided_slice %19 {offsets = [1, 0], sizes = [1, 32], strides = [1, 1]} : vector<2x32xf32> to vector<1x32xf32>
      %cst_16 = arith.constant 3.906250e-03 : f32
      %24 = vector.broadcast %cst_16 : f32 to vector<1x32xf32>
      %25 = arith.mulf %23, %24 : vector<1x32xf32>
      %26 = arith.mulf %22, %22 : vector<1x32xf32>
      %27 = arith.subf %25, %26 : vector<1x32xf32>
      %cst_17 = arith.constant 0.000000e+00 : f32
      %28 = vector.broadcast %cst_17 : f32 to vector<1x32xf32>
      %29 = arith.maximumf %27, %28 : vector<1x32xf32>
      %cst_18 = arith.constant 9.99999974E-6 : f32
      %30 = vector.broadcast %cst_18 : f32 to vector<1x32xf32>
      %31 = arith.addf %29, %30 : vector<1x32xf32>
      %32 = math.rsqrt %31 : vector<1x32xf32>
      %33 = tpu.concatenate %22, %32 in 0 : vector<1x32xf32>, vector<1x32xf32> -> vector<2x32xf32>
      %cst_19 = arith.constant dense<0.000000e+00> : vector<2x128xf32>
      %34 = tpu.matmul %33, %17, %cst_19 {dimension_numbers = #tpu.dot_dimension_numbers<[1], [1], [0], [0], [0, 0, 1, 0], [], []>} : vector<2x32xf32>, vector<128x32xf32>, vector<2x128xf32> -> vector<2x128xf32>
      %35 = vector.extract_strided_slice %34 {offsets = [1, 0], sizes = [1, 128], strides = [1, 1]} : vector<2x128xf32> to vector<1x128xf32>
      %c0_20 = arith.constant 0 : index
      %c0_21 = arith.constant 0 : index
      %36 = vector.load %arg3[%c0_20, %c0_21] : memref<1x128xf32, #tpu.memory_space<vmem>>, vector<1x128xf32>
      %37 = arith.mulf %35, %36 : vector<1x128xf32>
      %c0_22 = arith.constant 0 : index
      %c0_23 = arith.constant 0 : index
      %38 = vector.load %arg4[%c0_22, %c0_23] : memref<1x128xf32, #tpu.memory_space<vmem>>, vector<1x128xf32>
      %39 = vector.extract_strided_slice %34 {offsets = [0, 0], sizes = [1, 128], strides = [1, 1]} : vector<2x128xf32> to vector<1x128xf32>
      %40 = arith.mulf %39, %37 : vector<1x128xf32>
      %41 = arith.subf %38, %40 : vector<1x128xf32>
      %42 = tpu.concatenate %37, %41 in 0 : vector<1x128xf32>, vector<1x128xf32> -> vector<2x128xf32>
      %c0_24 = arith.constant 0 : index
      %c0_25 = arith.constant 0 : index
      %c0_26 = arith.constant 0 : index
      %43 = vector.load %arg6[%c0_24, %c0_25, %c0_26] : memref<1x2x128xf32, #tpu.memory_space<vmem>>, vector<1x2x128xf32>
      %44 = vector.shape_cast %43 : vector<1x2x128xf32> to vector<2x128xf32>
      %45 = vector.shape_cast %42 : vector<2x128xf32> to vector<1x2x128xf32>
      tpu.vector_store %arg6[%c0_24, %c0_25, %c0_26], %45 {strides = array<i32>} : memref<1x2x128xf32, #tpu.memory_space<vmem>>, vector<1x2x128xf32>,
    } else {
    }
    return
  }
  func.func @transform_0(%arg0: i32, %arg1: i32) -> (i32, i32, i32) {
    %c0_i32 = arith.constant 0 : i32
    %c0_i32_0 = arith.constant 0 : i32
    return %arg0, %arg1, %c0_i32 : i32, i32, i32
  }
  func.func @transform_1(%arg0: i32, %arg1: i32) -> (i32, i32) {
    %c0_i32 = arith.constant 0 : i32
    %c0_i32_0 = arith.constant 0 : i32
    %c0_i32_1 = arith.constant 0 : i32
    return %c0_i32, %c0_i32_0 : i32, i32
  }
  func.func @transform_2(%arg0: i32, %arg1: i32) -> (i32, i32) {
    %c0_i32 = arith.constant 0 : i32
    %c0_i32_0 = arith.constant 0 : i32
    %c0_i32_1 = arith.constant 0 : i32
    return %c0_i32, %c0_i32_0 : i32, i32
  }
  func.func @transform_3(%arg0: i32, %arg1: i32) -> (i32, i32) {
    %c0_i32 = arith.constant 0 : i32
    %c0_i32_0 = arith.constant 0 : i32
    %c0_i32_1 = arith.constant 0 : i32
    return %c0_i32, %c0_i32_0 : i32, i32
  }
  func.func @transform_4(%arg0: i32, %arg1: i32) -> (i32, i32, i32) {
    %c0_i32 = arith.constant 0 : i32
    %c0_i32_0 = arith.constant 0 : i32
    %c0_i32_1 = arith.constant 0 : i32
    return %arg0, %c0_i32, %c0_i32_0 : i32, i32, i32
  }
}

module attributes {stable_mosaic.version = 11 : i64} {
  func.func @_flash_attn_kernel(%arg0: i32, %arg1: i32, %arg2: i32, %arg3: memref<1x32x128xf32, #tpu.memory_space<vmem>>, %arg4: memref<1x64x128xbf16, #tpu.memory_space<vmem>>, %arg5: memref<1x64x128xbf16, #tpu.memory_space<vmem>>, %arg6: memref<1x2x128xf32, #tpu.memory_space<vmem>>, %arg7: memref<128x128xbf16, #tpu.memory_space<vmem>>, %arg8: memref<1x128xf32, #tpu.memory_space<vmem>>, %arg9: memref<128x128xbf16, #tpu.memory_space<vmem>>, %arg10: memref<1x128xf32, #tpu.memory_space<vmem>>, %arg11: memref<1x32x128xf32, #tpu.memory_space<vmem>>, %arg12: memref<32x128xbf16, #tpu.memory_space<vmem>>, %arg13: memref<32x1xf32, #tpu.memory_space<vmem>>, %arg14: memref<32x1xf32, #tpu.memory_space<vmem>>, %arg15: memref<32x128xf32, #tpu.memory_space<vmem>>) attributes {dimension_semantics = [#tpu.dimension_semantics<parallel>, #tpu.dimension_semantics<parallel>, #tpu.dimension_semantics<arbitrary>], iteration_bounds = array<i64: 2, 2, 2>, scalar_prefetch = 0 : i64, scratch_operands = 4 : i64, tpu.core_type = #tpu.core_type<tc>, window_params = [{transform_indices = @transform_0, window_bounds = array<i64: 1, 32, 128>}, {transform_indices = @transform_1, window_bounds = array<i64: 1, 64, 128>}, {transform_indices = @transform_2, window_bounds = array<i64: 1, 64, 128>}, {transform_indices = @transform_3, window_bounds = array<i64: 1, 2, 128>}, {pipeline_mode = #tpu.pipeline_mode<synchronous>, transform_indices = @transform_4, window_bounds = array<i64: 128, 128>}, {pipeline_mode = #tpu.pipeline_mode<synchronous>, transform_indices = @transform_5, window_bounds = array<i64: 1, 128>}, {pipeline_mode = #tpu.pipeline_mode<synchronous>, transform_indices = @transform_6, window_bounds = array<i64: 128, 128>}, {pipeline_mode = #tpu.pipeline_mode<synchronous>, transform_indices = @transform_7, window_bounds = array<i64: 1, 128>}, {transform_indices = @transform_8, window_bounds = array<i64: 1, 32, 128>}]} {
    %c0 = arith.constant 0 : index
    %c0_0 = arith.constant 0 : index
    %c0_1 = arith.constant 0 : index
    %0 = vector.load %arg6[%c0, %c0_0, %c0_1] : memref<1x2x128xf32, #tpu.memory_space<vmem>>, vector<1x2x128xf32>
    %1 = vector.shape_cast %0 : vector<1x2x128xf32> to vector<2x128xf32>
    %2 = vector.extract_strided_slice %1 {offsets = [0, 0], sizes = [1, 128], strides = [1, 1]} : vector<2x128xf32> to vector<1x128xf32>
    %3 = vector.extract_strided_slice %1 {offsets = [1, 0], sizes = [1, 128], strides = [1, 1]} : vector<2x128xf32> to vector<1x128xf32>
    %c0_i32 = arith.constant 0 : i32
    %4 = arith.cmpi eq, %arg2, %c0_i32 : i32
    %5 = arith.extui %4 : i1 to i32
    %c0_i32_2 = arith.constant 0 : i32
    %6 = arith.cmpi ne, %5, %c0_i32_2 : i32
    scf.if %6 {
      %c0_25 = arith.constant 0 : index
      %c0_26 = arith.constant 0 : index
      %c0_27 = arith.constant 0 : index
      %43 = vector.load %arg3[%c0_25, %c0_26, %c0_27] : memref<1x32x128xf32, #tpu.memory_space<vmem>>, vector<1x32x128xf32>
      %44 = vector.shape_cast %43 : vector<1x32x128xf32> to vector<32x128xf32>
      %45 = vector.broadcast %2 : vector<1x128xf32> to vector<32x128xf32>
      %46 = arith.mulf %44, %45 : vector<32x128xf32>
      %47 = vector.broadcast %3 : vector<1x128xf32> to vector<32x128xf32>
      %48 = arith.addf %46, %47 : vector<32x128xf32>
      %49 = arith.truncf %48 : vector<32x128xf32> to vector<32x128xbf16>
      %c0_28 = arith.constant 0 : index
      %c0_29 = arith.constant 0 : index
      %50 = vector.load %arg7[%c0_28, %c0_29] : memref<128x128xbf16, #tpu.memory_space<vmem>>, vector<128x128xbf16>
      %cst_30 = arith.constant dense<0.000000e+00> : vector<32x128xf32>
      %51 = tpu.matmul %49, %50, %cst_30 {dimension_numbers = #tpu.dot_dimension_numbers<[1], [0], [0], [1], [0, 0, 1, 1], [], []>} : vector<32x128xbf16>, vector<128x128xbf16>, vector<32x128xf32> -> vector<32x128xf32>
      %c0_31 = arith.constant 0 : index
      %c0_32 = arith.constant 0 : index
      %52 = vector.load %arg8[%c0_31, %c0_32] : memref<1x128xf32, #tpu.memory_space<vmem>>, vector<1x128xf32>
      %53 = vector.broadcast %52 : vector<1x128xf32> to vector<32x128xf32>
      %54 = arith.addf %51, %53 : vector<32x128xf32>
      %cst_33 = arith.constant 0.0883883461 : f32
      %55 = vector.broadcast %cst_33 : f32 to vector<32x128xf32>
      %56 = arith.mulf %54, %55 : vector<32x128xf32>
      %57 = arith.truncf %56 : vector<32x128xf32> to vector<32x128xbf16>
      %c0_34 = arith.constant 0 : index
      %c0_35 = arith.constant 0 : index
      %58 = vector.load %arg12[%c0_34, %c0_35] : memref<32x128xbf16, #tpu.memory_space<vmem>>, vector<32x128xbf16>
      tpu.vector_store %arg12[%c0_34, %c0_35], %57 {strides = array<i32>} : memref<32x128xbf16, #tpu.memory_space<vmem>>, vector<32x128xbf16>,
      %cst_36 = arith.constant 0xFF800000 : f32
      %59 = vector.broadcast %cst_36 : f32 to vector<32x1xf32>
      %c0_37 = arith.constant 0 : index
      %c0_38 = arith.constant 0 : index
      %60 = vector.load %arg13[%c0_37, %c0_38] : memref<32x1xf32, #tpu.memory_space<vmem>>, vector<32x1xf32>
      tpu.vector_store %arg13[%c0_37, %c0_38], %59 {strides = array<i32>} : memref<32x1xf32, #tpu.memory_space<vmem>>, vector<32x1xf32>,
      %cst_39 = arith.constant 0.000000e+00 : f32
      %61 = vector.broadcast %cst_39 : f32 to vector<32x1xf32>
      %c0_40 = arith.constant 0 : index
      %c0_41 = arith.constant 0 : index
      %62 = vector.load %arg14[%c0_40, %c0_41] : memref<32x1xf32, #tpu.memory_space<vmem>>, vector<32x1xf32>
      tpu.vector_store %arg14[%c0_40, %c0_41], %61 {strides = array<i32>} : memref<32x1xf32, #tpu.memory_space<vmem>>, vector<32x1xf32>,
      %cst_42 = arith.constant 0.000000e+00 : f32
      %63 = vector.broadcast %cst_42 : f32 to vector<32x128xf32>
      %c0_43 = arith.constant 0 : index
      %c0_44 = arith.constant 0 : index
      %64 = vector.load %arg15[%c0_43, %c0_44] : memref<32x128xf32, #tpu.memory_space<vmem>>, vector<32x128xf32>
      tpu.vector_store %arg15[%c0_43, %c0_44], %63 {strides = array<i32>} : memref<32x128xf32, #tpu.memory_space<vmem>>, vector<32x128xf32>,
    } else {
    }
    %c32_i32 = arith.constant 32 : i32
    %7 = arith.muli %arg2, %c32_i32 : i32
    %8 = tpu.assume_multiple %7, 32 : i32
    %c0_3 = arith.constant 0 : index
    %9 = arith.index_cast %8 : i32 to index
    %c0_4 = arith.constant 0 : index
    %10 = vector.load %arg4[%c0_3, %9, %c0_4] : memref<1x64x128xbf16, #tpu.memory_space<vmem>>, vector<1x32x128xbf16>
    %11 = vector.shape_cast %10 : vector<1x32x128xbf16> to vector<32x128xbf16>
    %c0_5 = arith.constant 0 : index
    %12 = arith.index_cast %8 : i32 to index
    %c0_6 = arith.constant 0 : index
    %13 = vector.load %arg5[%c0_5, %12, %c0_6] : memref<1x64x128xbf16, #tpu.memory_space<vmem>>, vector<1x32x128xbf16>
    %14 = vector.shape_cast %13 : vector<1x32x128xbf16> to vector<32x128xbf16>
    %c0_7 = arith.constant 0 : index
    %c0_8 = arith.constant 0 : index
    %15 = vector.load %arg12[%c0_7, %c0_8] : memref<32x128xbf16, #tpu.memory_space<vmem>>, vector<32x128xbf16>
    %cst = arith.constant dense<0.000000e+00> : vector<32x32xf32>
    %16 = tpu.matmul %15, %11, %cst {dimension_numbers = #tpu.dot_dimension_numbers<[1], [1], [0], [0], [0, 0, 1, 0], [], []>} : vector<32x128xbf16>, vector<32x128xbf16>, vector<32x32xf32> -> vector<32x32xf32>
    %c0_9 = arith.constant 0 : index
    %c0_10 = arith.constant 0 : index
    %17 = vector.load %arg13[%c0_9, %c0_10] : memref<32x1xf32, #tpu.memory_space<vmem>>, vector<32x1xf32>
    %cst_11 = arith.constant dense<0xFF800000> : vector<32xf32>
    %18 = vector.multi_reduction <maximumf>, %16, %cst_11 [1] : vector<32x32xf32> to vector<32xf32>
    %19 = vector.shape_cast %18 : vector<32xf32> to vector<32x1xf32>
    %20 = arith.maximumf %17, %19 : vector<32x1xf32>
    %21 = arith.subf %17, %20 : vector<32x1xf32>
    %22 = math.exp %21 : vector<32x1xf32>
    %23 = vector.broadcast %20 : vector<32x1xf32> to vector<32x32xf32>
    %24 = arith.subf %16, %23 : vector<32x32xf32>
    %25 = math.exp %24 : vector<32x32xf32>
    %c0_12 = arith.constant 0 : index
    %c0_13 = arith.constant 0 : index
    %26 = vector.load %arg14[%c0_12, %c0_13] : memref<32x1xf32, #tpu.memory_space<vmem>>, vector<32x1xf32>
    %27 = arith.mulf %22, %26 : vector<32x1xf32>
    %cst_14 = arith.constant dense<0.000000e+00> : vector<32xf32>
    %28 = vector.multi_reduction <add>, %25, %cst_14 [1] : vector<32x32xf32> to vector<32xf32>
    %29 = vector.shape_cast %28 : vector<32xf32> to vector<32x1xf32>
    %30 = arith.addf %27, %29 : vector<32x1xf32>
    %c0_15 = arith.constant 0 : index
    %c0_16 = arith.constant 0 : index
    %31 = vector.load %arg14[%c0_15, %c0_16] : memref<32x1xf32, #tpu.memory_space<vmem>>, vector<32x1xf32>
    tpu.vector_store %arg14[%c0_15, %c0_16], %30 {strides = array<i32>} : memref<32x1xf32, #tpu.memory_space<vmem>>, vector<32x1xf32>,
    %c0_17 = arith.constant 0 : index
    %c0_18 = arith.constant 0 : index
    %32 = vector.load %arg15[%c0_17, %c0_18] : memref<32x128xf32, #tpu.memory_space<vmem>>, vector<32x128xf32>
    %33 = vector.broadcast %22 : vector<32x1xf32> to vector<32x128xf32>
    %34 = arith.mulf %33, %32 : vector<32x128xf32>
    %35 = arith.truncf %25 : vector<32x32xf32> to vector<32x32xbf16>
    %cst_19 = arith.constant dense<0.000000e+00> : vector<32x128xf32>
    %36 = tpu.matmul %35, %14, %cst_19 {dimension_numbers = #tpu.dot_dimension_numbers<[1], [0], [0], [1], [0, 0, 1, 1], [], []>} : vector<32x32xbf16>, vector<32x128xbf16>, vector<32x128xf32> -> vector<32x128xf32>
    %37 = arith.addf %34, %36 : vector<32x128xf32>
    %c0_20 = arith.constant 0 : index
    %c0_21 = arith.constant 0 : index
    %38 = vector.load %arg15[%c0_20, %c0_21] : memref<32x128xf32, #tpu.memory_space<vmem>>, vector<32x128xf32>
    tpu.vector_store %arg15[%c0_20, %c0_21], %37 {strides = array<i32>} : memref<32x128xf32, #tpu.memory_space<vmem>>, vector<32x128xf32>,
    %c0_22 = arith.constant 0 : index
    %c0_23 = arith.constant 0 : index
    %39 = vector.load %arg13[%c0_22, %c0_23] : memref<32x1xf32, #tpu.memory_space<vmem>>, vector<32x1xf32>
    tpu.vector_store %arg13[%c0_22, %c0_23], %20 {strides = array<i32>} : memref<32x1xf32, #tpu.memory_space<vmem>>, vector<32x1xf32>,
    %c1_i32 = arith.constant 1 : i32
    %40 = arith.cmpi eq, %arg2, %c1_i32 : i32
    %41 = arith.extui %40 : i1 to i32
    %c0_i32_24 = arith.constant 0 : i32
    %42 = arith.cmpi ne, %41, %c0_i32_24 : i32
    scf.if %42 {
      %c0_25 = arith.constant 0 : index
      %c0_26 = arith.constant 0 : index
      %43 = vector.load %arg14[%c0_25, %c0_26] : memref<32x1xf32, #tpu.memory_space<vmem>>, vector<32x1xf32>
      %44 = tpu.reciprocal %43 {approx = true} : vector<32x1xf32> -> vector<32x1xf32>
      %c0_27 = arith.constant 0 : index
      %c0_28 = arith.constant 0 : index
      %45 = vector.load %arg15[%c0_27, %c0_28] : memref<32x128xf32, #tpu.memory_space<vmem>>, vector<32x128xf32>
      %46 = vector.broadcast %44 : vector<32x1xf32> to vector<32x128xf32>
      %47 = arith.mulf %45, %46 : vector<32x128xf32>
      %48 = arith.truncf %47 : vector<32x128xf32> to vector<32x128xbf16>
      %c0_29 = arith.constant 0 : index
      %c0_30 = arith.constant 0 : index
      %49 = vector.load %arg9[%c0_29, %c0_30] : memref<128x128xbf16, #tpu.memory_space<vmem>>, vector<128x128xbf16>
      %cst_31 = arith.constant dense<0.000000e+00> : vector<32x128xf32>
      %50 = tpu.matmul %48, %49, %cst_31 {dimension_numbers = #tpu.dot_dimension_numbers<[1], [0], [0], [1], [0, 0, 1, 1], [], []>} : vector<32x128xbf16>, vector<128x128xbf16>, vector<32x128xf32> -> vector<32x128xf32>
      %c0_32 = arith.constant 0 : index
      %c0_33 = arith.constant 0 : index
      %51 = vector.load %arg10[%c0_32, %c0_33] : memref<1x128xf32, #tpu.memory_space<vmem>>, vector<1x128xf32>
      %52 = vector.broadcast %51 : vector<1x128xf32> to vector<32x128xf32>
      %53 = arith.addf %50, %52 : vector<32x128xf32>
      %c0_34 = arith.constant 0 : index
      %c0_35 = arith.constant 0 : index
      %c0_36 = arith.constant 0 : index
      %54 = vector.load %arg3[%c0_34, %c0_35, %c0_36] : memref<1x32x128xf32, #tpu.memory_space<vmem>>, vector<1x32x128xf32>
      %55 = vector.shape_cast %54 : vector<1x32x128xf32> to vector<32x128xf32>
      %56 = arith.addf %53, %55 : vector<32x128xf32>
      %c0_37 = arith.constant 0 : index
      %c0_38 = arith.constant 0 : index
      %c0_39 = arith.constant 0 : index
      %57 = vector.load %arg11[%c0_37, %c0_38, %c0_39] : memref<1x32x128xf32, #tpu.memory_space<vmem>>, vector<1x32x128xf32>
      %58 = vector.shape_cast %57 : vector<1x32x128xf32> to vector<32x128xf32>
      %59 = vector.shape_cast %56 : vector<32x128xf32> to vector<1x32x128xf32>
      tpu.vector_store %arg11[%c0_37, %c0_38, %c0_39], %59 {strides = array<i32>} : memref<1x32x128xf32, #tpu.memory_space<vmem>>, vector<1x32x128xf32>,
    } else {
    }
    return
  }
  func.func @transform_0(%arg0: i32, %arg1: i32, %arg2: i32) -> (i32, i32, i32) {
    %c0_i32 = arith.constant 0 : i32
    %c0_i32_0 = arith.constant 0 : i32
    return %arg0, %arg1, %c0_i32 : i32, i32, i32
  }
  func.func @transform_1(%arg0: i32, %arg1: i32, %arg2: i32) -> (i32, i32, i32) {
    %c0_i32 = arith.constant 0 : i32
    %c0_i32_0 = arith.constant 0 : i32
    %c0_i32_1 = arith.constant 0 : i32
    return %arg0, %c0_i32, %c0_i32_0 : i32, i32, i32
  }
  func.func @transform_2(%arg0: i32, %arg1: i32, %arg2: i32) -> (i32, i32, i32) {
    %c0_i32 = arith.constant 0 : i32
    %c0_i32_0 = arith.constant 0 : i32
    %c0_i32_1 = arith.constant 0 : i32
    return %arg0, %c0_i32, %c0_i32_0 : i32, i32, i32
  }
  func.func @transform_3(%arg0: i32, %arg1: i32, %arg2: i32) -> (i32, i32, i32) {
    %c0_i32 = arith.constant 0 : i32
    %c0_i32_0 = arith.constant 0 : i32
    %c0_i32_1 = arith.constant 0 : i32
    return %arg0, %c0_i32, %c0_i32_0 : i32, i32, i32
  }
  func.func @transform_4(%arg0: i32, %arg1: i32, %arg2: i32) -> (i32, i32) {
    %c0_i32 = arith.constant 0 : i32
    %c0_i32_0 = arith.constant 0 : i32
    %c0_i32_1 = arith.constant 0 : i32
    return %c0_i32, %c0_i32_0 : i32, i32
  }
  func.func @transform_5(%arg0: i32, %arg1: i32, %arg2: i32) -> (i32, i32) {
    %c0_i32 = arith.constant 0 : i32
    %c0_i32_0 = arith.constant 0 : i32
    %c0_i32_1 = arith.constant 0 : i32
    return %c0_i32, %c0_i32_0 : i32, i32
  }
  func.func @transform_6(%arg0: i32, %arg1: i32, %arg2: i32) -> (i32, i32) {
    %c0_i32 = arith.constant 0 : i32
    %c0_i32_0 = arith.constant 0 : i32
    %c0_i32_1 = arith.constant 0 : i32
    return %c0_i32, %c0_i32_0 : i32, i32
  }
  func.func @transform_7(%arg0: i32, %arg1: i32, %arg2: i32) -> (i32, i32) {
    %c0_i32 = arith.constant 0 : i32
    %c0_i32_0 = arith.constant 0 : i32
    %c0_i32_1 = arith.constant 0 : i32
    return %c0_i32, %c0_i32_0 : i32, i32
  }
  func.func @transform_8(%arg0: i32, %arg1: i32, %arg2: i32) -> (i32, i32, i32) {
    %c0_i32 = arith.constant 0 : i32
    %c0_i32_0 = arith.constant 0 : i32
    return %arg0, %arg1, %c0_i32 : i32, i32, i32
  }
}

</mosaic_0001>

<llo_original>
// kernel: self_attention_block.4
$region0: #{self_attention_block.4}
  #allocation0 [shape = 'u32[]', space=smem, size = 0x4, offset = 0x4, fixed_abs, tag = 'smem constant byte address 0x4 - core index']
  #allocation1 [shape = 'u32[72,128]{1,0:T(1,128)}', space=vmem, size = 0x9000, scoped, tag = 'internal scratch']
  %s0 = inlined_call_operand.vmem [shape: f32[2,64,128], index: 0, kind: input, shape index: {}]
  %s1 = inlined_call_operand.vmem [shape: f32[2,2,128], index: 1, kind: input, shape index: {}]
  %s2 = inlined_call_operand.hbm [shape: bf16[128,128], index: 2, kind: input, shape index: {}]
  %s3 = inlined_call_operand.hbm [shape: bf16[128,128], index: 3, kind: input, shape index: {}]
  %s4 = inlined_call_operand.vmem [shape: f32[1,128], index: 4, kind: input, shape index: {}]
  %s5 = inlined_call_operand.vmem [shape: f32[1,128], index: 5, kind: input, shape index: {}]
  %s6 = inlined_call_operand.vmem [shape: bf16[2,64,128], index: 6, kind: output, shape index: {0}]
  %s7 = inlined_call_operand.vmem [shape: bf16[2,64,128], index: 7, kind: output, shape index: {1}]
  %8 = xla_tuple %s6, %s7
  %s9 = sld [smem:[#allocation0]]
  $region73: #{self_attention_block.4} parent=0
    _
  %s11 = ssub.s32 1, %s9
  %s12 = scalar_select 0, %s11, %s9
  $region1: #{self_attention_block.4} parent=0
    #allocation2 [shape = 'u8[32768]{0}', space=vmem, size = 0x8000, scoped, tag = 'input window, operand 2, single buffered']
    #allocation3 [shape = 's32[2]{0}', space=sflag, size = 0x8, scoped, tag = 'scoped memory for self_attention_block.4']
    #allocation4 [shape = 'u8[32768]{0}', space=vmem, size = 0x8000, scoped, tag = 'input window, operand 3, single buffered']
    #allocation5 [shape = 's32[1]{0}', space=sflag, size = 0x4, scoped, tag = 'scoped memory for self_attention_block.4']
    %13 = vsyncpa [#allocation3], 0
    %14 = vsyncpa [#allocation5], 0
    loop: start=0, step=1, limit=4
    $region2: #{self_attention_block.4} parent=1 // loop_pre_header
      _
    $region3: #{self_attention_block.4} parent=1 // loop_header
      %s16 = sphi 0, %s20
      %p17 = scmp.ge.s32.totalorder %s16, 4
      %s23 = sphi 0, %s35
      %s24 = sphi 0, %s31
      %s25 = sphi 0, %s23
      %s26 = sphi 0, %s24
      %s27 = sphi 0, %s25
      %s28 = sphi 0, %s26
      %s40 = sphi 0, %s42
      %s43 = sphi 0, %s40
      %s44 = sphi 0, %s43
      %s60 = sphi 0, %s44
      %s66 = sphi 0, %s68
      %s69 = sphi 0, %s66
      %s70 = sphi 0, %s69
      %s86 = sphi 0, %s70
      %s90 = sphi 0, %s90
      %s92 = sphi 0, %s90
      %s93 = sphi 0, %s92
      %s107 = sphi 0, %s93
      %s111 = sphi 0, %s111
      %s113 = sphi 0, %s111
      %s114 = sphi 0, %s113
      %s128 = sphi 0, %s114
      %s132 = sphi 0, %s132
      %s134 = sphi 0, %s132
      %s135 = sphi 0, %s134
      %s149 = sphi 0, %s135
      %s153 = sphi 0, %s153
      %s155 = sphi 0, %s153
      %s156 = sphi 0, %s155
      %s170 = sphi 0, %s156
      %s178 = sphi 0, %s180
      %s181 = sphi 0, %s178
      %s182 = sphi 0, %s181
      %s198 = sphi 0, %s182
      %s206 = sphi 0, %s208
      %s209 = sphi 0, %s206
      %s210 = sphi 0, %s209
      %s226 = sphi 0, %s210
    $region4: #{self_attention_block.4} parent=1 // loop_header_branch
      %19 = sbr.rel (%p17) target = $region8
    $region5: #{self_attention_block.4} parent=1 // loop_body
      %s21 = ssub.s32 %s16, 1
      %s22 = ssub.s32 %s16, 2
      %s29 = sadd.s32 1, %s24
      %p30 = scmp.ge.s32.totalorder %s29, 1
      %s31 = scalar_select %p30, 0, %s29
      %s32 = sadd.s32 1, %s23
      %s33 = scalar_select %p30, %s32, %s23
      %p34 = scmp.ge.s32.totalorder %s33, 2
      %s35 = scalar_select %p34, 0, %s33
      %s36 = ssub.s32 %s23, %s35
      %s37 = ssub.s32 %s24, %s31
      %s38 = sor.u32 %s36, %s37
      %p39 = scmp.eq.s32.totalorder %s38, 0
      %s41 = sadd.s32 %s40, 1
      %s42 = scalar_select %p39, %s40, %s41
      %p45 = pneg %p39
      %p46 = scmp.eq.s32.totalorder %s16, 1
      %p47 = por %p45, %p46
      %p48 = scmp.ne.s32.totalorder %s40, %s43
      %p49 = scmp.eq.s32.totalorder %s16, 0
      %p50 = por %p48, %p49
      %p51 = scmp.ne.s32.totalorder %s40, %s43
      %p52 = scmp.eq.s32.totalorder %s21, 1
      %p53 = por %p51, %p52
      %p54 = scmp.ne.s32.totalorder %s43, %s44
      %p55 = scmp.eq.s32.totalorder %s21, 0
      %p56 = por %p54, %p55
      %p57 = scmp.ne.s32.totalorder %s43, %s44
      %p58 = scmp.eq.s32.totalorder %s22, 1
      %p59 = por %p57, %p58
      %p61 = scmp.ne.s32.totalorder %s44, %s60
      %p62 = scmp.eq.s32.totalorder %s22, 0
      %p63 = por %p61, %p62
      %s64 = ssub.s32 %s23, %s35
      %p65 = scmp.eq.s32.totalorder %s64, 0
      %s67 = sadd.s32 %s66, 1
      %s68 = scalar_select %p65, %s66, %s67
      %p71 = pneg %p65
      %p72 = scmp.eq.s32.totalorder %s16, 1
      %p73 = por %p71, %p72
      %p74 = scmp.ne.s32.totalorder %s66, %s69
      %p75 = scmp.eq.s32.totalorder %s16, 0
      %p76 = por %p74, %p75
      %p77 = scmp.ne.s32.totalorder %s66, %s69
      %p78 = scmp.eq.s32.totalorder %s21, 1
      %p79 = por %p77, %p78
      %p80 = scmp.ne.s32.totalorder %s69, %s70
      %p81 = scmp.eq.s32.totalorder %s21, 0
      %p82 = por %p80, %p81
      %p83 = scmp.ne.s32.totalorder %s69, %s70
      %p84 = scmp.eq.s32.totalorder %s22, 1
      %p85 = por %p83, %p84
      %p87 = scmp.ne.s32.totalorder %s70, %s86
      %p88 = scmp.eq.s32.totalorder %s22, 0
      %p89 = por %p87, %p88
      %s91 = sadd.s32 %s90, 1
      %p94 = scmp.eq.s32.totalorder %s16, 1
      %p95 = scmp.ne.s32.totalorder %s90, %s92
      %p96 = scmp.eq.s32.totalorder %s16, 0
      %p97 = por %p95, %p96
      %p98 = scmp.ne.s32.totalorder %s90, %s92
      %p99 = scmp.eq.s32.totalorder %s21, 1
      %p100 = por %p98, %p99
      %p101 = scmp.ne.s32.totalorder %s92, %s93
      %p102 = scmp.eq.s32.totalorder %s21, 0
      %p103 = por %p101, %p102
      %p104 = scmp.ne.s32.totalorder %s92, %s93
      %p105 = scmp.eq.s32.totalorder %s22, 1
      %p106 = por %p104, %p105
      %p108 = scmp.ne.s32.totalorder %s93, %s107
      %p109 = scmp.eq.s32.totalorder %s22, 0
      %p110 = por %p108, %p109
      %s112 = sadd.s32 %s111, 1
      %p115 = scmp.eq.s32.totalorder %s16, 1
      %p116 = scmp.ne.s32.totalorder %s111, %s113
      %p117 = scmp.eq.s32.totalorder %s16, 0
      %p118 = por %p116, %p117
      %p119 = scmp.ne.s32.totalorder %s111, %s113
      %p120 = scmp.eq.s32.totalorder %s21, 1
      %p121 = por %p119, %p120
      %p122 = scmp.ne.s32.totalorder %s113, %s114
      %p123 = scmp.eq.s32.totalorder %s21, 0
      %p124 = por %p122, %p123
      %p125 = scmp.ne.s32.totalorder %s113, %s114
      %p126 = scmp.eq.s32.totalorder %s22, 1
      %p127 = por %p125, %p126
      %p129 = scmp.ne.s32.totalorder %s114, %s128
      %p130 = scmp.eq.s32.totalorder %s22, 0
      %p131 = por %p129, %p130
      %s133 = sadd.s32 %s132, 1
      %p136 = scmp.eq.s32.totalorder %s16, 1
      %p137 = scmp.ne.s32.totalorder %s132, %s134
      %p138 = scmp.eq.s32.totalorder %s16, 0
      %p139 = por %p137, %p138
      %p140 = scmp.ne.s32.totalorder %s132, %s134
      %p141 = scmp.eq.s32.totalorder %s21, 1
      %p142 = por %p140, %p141
      %p143 = scmp.ne.s32.totalorder %s134, %s135
      %p144 = scmp.eq.s32.totalorder %s21, 0
      %p145 = por %p143, %p144
      %p146 = scmp.ne.s32.totalorder %s134, %s135
      %p147 = scmp.eq.s32.totalorder %s22, 1
      %p148 = por %p146, %p147
      %p150 = scmp.ne.s32.totalorder %s135, %s149
      %p151 = scmp.eq.s32.totalorder %s22, 0
      %p152 = por %p150, %p151
      %s154 = sadd.s32 %s153, 1
      %p157 = scmp.eq.s32.totalorder %s16, 1
      %p158 = scmp.ne.s32.totalorder %s153, %s155
      %p159 = scmp.eq.s32.totalorder %s16, 0
      %p160 = por %p158, %p159
      %p161 = scmp.ne.s32.totalorder %s153, %s155
      %p162 = scmp.eq.s32.totalorder %s21, 1
      %p163 = por %p161, %p162
      %p164 = scmp.ne.s32.totalorder %s155, %s156
      %p165 = scmp.eq.s32.totalorder %s21, 0
      %p166 = por %p164, %p165
      %p167 = scmp.ne.s32.totalorder %s155, %s156
      %p168 = scmp.eq.s32.totalorder %s22, 1
      %p169 = por %p167, %p168
      %p171 = scmp.ne.s32.totalorder %s156, %s170
      %p172 = scmp.eq.s32.totalorder %s22, 0
      %p173 = por %p171, %p172
      %s174 = ssub.s32 %s23, %s35
      %s175 = ssub.s32 %s24, %s31
      %s176 = sor.u32 %s174, %s175
      %p177 = scmp.eq.s32.totalorder %s176, 0
      %s179 = sadd.s32 %s178, 1
      %s180 = scalar_select %p177, %s178, %s179
      %p183 = pneg %p177
      %p184 = scmp.eq.s32.totalorder %s16, 1
      %p185 = por %p183, %p184
      %p186 = scmp.ne.s32.totalorder %s178, %s181
      %p187 = scmp.eq.s32.totalorder %s16, 0
      %p188 = por %p186, %p187
      %p189 = scmp.ne.s32.totalorder %s178, %s181
      %p190 = scmp.eq.s32.totalorder %s21, 1
      %p191 = por %p189, %p190
      %p192 = scmp.ne.s32.totalorder %s181, %s182
      %p193 = scmp.eq.s32.totalorder %s21, 0
      %p194 = por %p192, %p193
      %p195 = scmp.ne.s32.totalorder %s181, %s182
      %p196 = scmp.eq.s32.totalorder %s22, 1
      %p197 = por %p195, %p196
      %p199 = scmp.ne.s32.totalorder %s182, %s198
      %p200 = scmp.eq.s32.totalorder %s22, 0
      %p201 = por %p199, %p200
      %s202 = ssub.s32 %s23, %s35
      %s203 = ssub.s32 %s24, %s31
      %s204 = sor.u32 %s202, %s203
      %p205 = scmp.eq.s32.totalorder %s204, 0
      %s207 = sadd.s32 %s206, 1
      %s208 = scalar_select %p205, %s206, %s207
      %p211 = pneg %p205
      %p212 = scmp.eq.s32.totalorder %s16, 1
      %p213 = por %p211, %p212
      %p214 = scmp.ne.s32.totalorder %s206, %s209
      %p215 = scmp.eq.s32.totalorder %s16, 0
      %p216 = por %p214, %p215
      %p217 = scmp.ne.s32.totalorder %s206, %s209
      %p218 = scmp.eq.s32.totalorder %s21, 1
      %p219 = por %p217, %p218
      %p220 = scmp.ne.s32.totalorder %s209, %s210
      %p221 = scmp.eq.s32.totalorder %s21, 0
      %p222 = por %p220, %p221
      %p223 = scmp.ne.s32.totalorder %s209, %s210
      %p224 = scmp.eq.s32.totalorder %s22, 1
      %p225 = por %p223, %p224
      %p227 = scmp.ne.s32.totalorder %s210, %s226
      %p228 = scmp.eq.s32.totalorder %s22, 0
      %p229 = por %p227, %p228
      %p230 = scmp.le.s32.totalorder 1, %s16
      %p231 = scmp.lt.s32.totalorder %s16, 3
      %p232 = pnand %p230, %p231
      %p233 = pneg %p232
      // Predicated region
      $region9: #{self_attention_block.4} parent=5 // pred_check
        _
      $region10: #{self_attention_block.4} parent=5 // pred_check_branch
        %235 = sbr.rel (%p232) target = $region12
      $region11: #{self_attention_block.4} parent=5 // pred_region
        %s236 = ssub.s32 %s16, 1
        // Predicated region
        $region13: #{self_attention_block.4} parent=11 // pred_check
          %p237 = pneg %p103
        $region14: #{self_attention_block.4} parent=11 // pred_check_branch
          %239 = sbr.rel (%p237) target = $region16
        $region15: #{self_attention_block.4} parent=11 // pred_region
          %241 = vsyncadd [#allocation3], 0
          %s242 = sshll.u32 %s2, 4
          %s243 = int_to_ptr.hbm [resolvable:$true] %s242
          %s244 = sshll.u32 [#allocation2], 4
          %s245 = int_to_ptr.vmem [resolvable:$true] %s244
          %250 = dma.hbm_to_vmem [thread:$0]  %s243, 1024, %s245, [#allocation3], 64, 64, 4
        $region16: #{self_attention_block.4} parent=11 // pred_fallthru
          _
        // Predicated region
        $region17: #{self_attention_block.4} parent=11 // pred_check
          %p251 = pneg %p124
        $region18: #{self_attention_block.4} parent=11 // pred_check_branch
          %253 = sbr.rel (%p251) target = $region20
        $region19: #{self_attention_block.4} parent=11 // pred_region
          %255 = vsyncadd [#allocation5], 0
          %s256 = sshll.u32 %s3, 4
          %s257 = int_to_ptr.hbm [resolvable:$true] %s256
          %s258 = sshll.u32 [#allocation4], 4
          %s259 = int_to_ptr.vmem [resolvable:$true] %s258
          %264 = dma.hbm_to_vmem [thread:$0]  %s257, 1024, %s259, [#allocation5], 64, 64, 4
        $region20: #{self_attention_block.4} parent=11 // pred_fallthru
          _
        // Predicated region
        $region21: #{self_attention_block.4} parent=11 // pred_check
          %p265 = pneg %p145
        $region22: #{self_attention_block.4} parent=11 // pred_check_branch
          %267 = sbr.rel (%p265) target = $region24
        $region23: #{self_attention_block.4} parent=11 // pred_region
          _
        $region24: #{self_attention_block.4} parent=11 // pred_fallthru
          _
        // Predicated region
        $region25: #{self_attention_block.4} parent=11 // pred_check
          %p268 = pneg %p166
        $region26: #{self_attention_block.4} parent=11 // pred_check_branch
          %270 = sbr.rel (%p268) target = $region28
        $region27: #{self_attention_block.4} parent=11 // pred_region
          _
        $region28: #{self_attention_block.4} parent=11 // pred_fallthru
          _
      $region12: #{self_attention_block.4} parent=5 // pred_fallthru
        _
      %p271 = scmp.lt.s32.totalorder %s16, 2
      // Predicated region
      $region29: #{self_attention_block.4} parent=5 // pred_check
        %p272 = pneg %p271
      $region30: #{self_attention_block.4} parent=5 // pred_check_branch
        %274 = sbr.rel (%p272) target = $region32
      $region31: #{self_attention_block.4} parent=5 // pred_region
        // Predicated region
        $region33: #{self_attention_block.4} parent=31 // pred_check
          %p275 = pneg %p50
        $region34: #{self_attention_block.4} parent=31 // pred_check_branch
          %277 = sbr.rel (%p275) target = $region36
        $region35: #{self_attention_block.4} parent=31 // pred_region
          %s278 = smul.u32 8, %s24
          %p279 = scmp.lt.s32.totalorder %s23, 1
          %s280 = scalar_select %p279, %s23, 1
          %p281 = scmp.lt.s32.totalorder %s278, 7
          %s282 = scalar_select %p281, %s278, 7
          %s283 = smul.addr %s280, 8
          %s284 = sadd.s32 %s282, %s283
          %s285 = smul.addr %s284, 8
          %s286 = scalar_lea.vmem %s0, %s285
          %s287 = smul.u32 8, %s24
        $region36: #{self_attention_block.4} parent=31 // pred_fallthru
          _
        // Predicated region
        $region37: #{self_attention_block.4} parent=31 // pred_check
          %p288 = pneg %p76
        $region38: #{self_attention_block.4} parent=31 // pred_check_branch
          %290 = sbr.rel (%p288) target = $region40
        $region39: #{self_attention_block.4} parent=31 // pred_region
          %p291 = scmp.lt.s32.totalorder %s23, 1
          %s292 = scalar_select %p291, %s23, 1
          %s293 = smul.addr %s292, 2
          %s294 = scalar_lea.vmem %s1, %s293
        $region40: #{self_attention_block.4} parent=31 // pred_fallthru
          _
      $region32: #{self_attention_block.4} parent=5 // pred_fallthru
        _
      %p295 = scmp.le.s32.totalorder 1, %s16
      %p296 = scmp.lt.s32.totalorder %s16, 3
      %p297 = pnand %p295, %p296
      %p298 = pneg %p297
      // Predicated region
      $region41: #{self_attention_block.4} parent=5 // pred_check
        _
      $region42: #{self_attention_block.4} parent=5 // pred_check_branch
        %300 = sbr.rel (%p297) target = $region44
      $region43: #{self_attention_block.4} parent=5 // pred_region
        %s301 = ssub.s32 %s16, 1
        // Predicated region
        $region45: #{self_attention_block.4} parent=43 // pred_check
          %p302 = pneg %p103
        $region46: #{self_attention_block.4} parent=43 // pred_check_branch
          %304 = sbr.rel (%p302) target = $region48
        $region47: #{self_attention_block.4} parent=43 // pred_region
          %306 = dma.done [#allocation3], 1024
        $region48: #{self_attention_block.4} parent=43 // pred_fallthru
          _
        // Predicated region
        $region49: #{self_attention_block.4} parent=43 // pred_check
          %p307 = pneg %p124
        $region50: #{self_attention_block.4} parent=43 // pred_check_branch
          %309 = sbr.rel (%p307) target = $region52
        $region51: #{self_attention_block.4} parent=43 // pred_region
          %311 = dma.done [#allocation5], 1024
        $region52: #{self_attention_block.4} parent=43 // pred_fallthru
          _
        %s312 = smul.u32 8, %s26
        %p313 = scmp.lt.s32.totalorder %s25, 1
        %s314 = scalar_select %p313, %s25, 1
        %p315 = scmp.lt.s32.totalorder %s312, 7
        %s316 = scalar_select %p315, %s312, 7
        %s317 = smul.addr %s314, 8
        %s318 = sadd.s32 %s316, %s317
        %s319 = smul.addr %s318, 8
        %s320 = scalar_lea.vmem %s0, %s319
        %p321 = pneg %p56
        %p322 = pneg %p53
        %p323 = scmp.lt.s32.totalorder %s25, 1
        %s324 = scalar_select %p323, %s25, 1
        %s325 = smul.addr %s324, 2
        %s326 = scalar_lea.vmem %s1, %s325
        %p327 = pneg %p82
        %p328 = pneg %p79
        %p329 = pneg %p103
        %p330 = pneg %p100
        %p331 = pneg %p124
        %p332 = pneg %p121
        %p333 = pneg %p145
        %p334 = pneg %p142
        %p335 = pneg %p166
        %p336 = pneg %p163
        %p337 = pneg %p194
        %p338 = pneg %p191
        %s339 = smul.u32 8, %s26
        %p340 = scmp.lt.s32.totalorder %s25, 1
        %s341 = scalar_select %p340, %s25, 1
        %p342 = scmp.lt.s32.totalorder %s339, 7
        %s343 = scalar_select %p342, %s339, 7
        %s344 = smul.addr %s341, 8
        %s345 = sadd.s32 %s343, %s344
        %s346 = smul.addr %s345, 4
        %s347 = scalar_lea.vmem %s6, %s346
        %p348 = pneg %p222
        %p349 = pneg %p219
        %s350 = smul.u32 8, %s26
        %p351 = scmp.lt.s32.totalorder %s25, 1
        %s352 = scalar_select %p351, %s25, 1
        %p353 = scmp.lt.s32.totalorder %s350, 7
        %s354 = scalar_select %p353, %s350, 7
        %s355 = smul.addr %s352, 8
        %s356 = sadd.s32 %s354, %s355
        %s357 = smul.addr %s356, 4
        %s358 = scalar_lea.vmem %s7, %s357
        %s359 = smul.u32 8, %s26
        %p360 = scmp.lt.s32.totalorder %s25, 1
        %s361 = scalar_select %p360, %s25, 1
        %p362 = scmp.lt.s32.totalorder %s359, 7
        %s363 = scalar_select %p362, %s359, 7
        %s364 = smul.addr %s361, 8
        %s365 = sadd.s32 %s363, %s364
        %s366 = smul.addr %s365, 8
        %s367 = scalar_lea.vmem %s0, %s366
        %s368 = smul.u32 8, %s26
        %p369 = scmp.lt.s32.totalorder %s25, 1
        %s370 = scalar_select %p369, %s25, 1
        %s371 = smul.addr %s370, 2
        %s372 = scalar_lea.vmem %s1, %s371
        %s373 = smul.u32 8, %s26
        %p374 = scmp.lt.s32.totalorder %s25, 1
        %s375 = scalar_select %p374, %s25, 1
        %p376 = scmp.lt.s32.totalorder %s373, 7
        %s377 = scalar_select %p376, %s373, 7
        %s378 = smul.addr %s375, 8
        %s379 = sadd.s32 %s377, %s378
        %s380 = smul.addr %s379, 4
        %s381 = scalar_lea.vmem %s6, %s380
        %s382 = smul.u32 8, %s26
        %s383 = smul.u32 8, %s26
        %p384 = scmp.lt.s32.totalorder %s25, 1
        %s385 = scalar_select %p384, %s25, 1
        %p386 = scmp.lt.s32.totalorder %s383, 7
        %s387 = scalar_select %p386, %s383, 7
        %s388 = smul.addr %s385, 8
        %s389 = sadd.s32 %s387, %s388
        %s390 = smul.addr %s389, 4
        %s391 = scalar_lea.vmem %s7, %s390
        %s392 = smul.u32 8, %s26
        %v393 = vld [vmem:[%s372] sm:$0x3]
        %v394 = vld [vmem:[%s367] sm:$0xff]
        %v395 = vld [vmem:[%s367 + $0x8] sm:$0xff]
        %v396 = vld [vmem:[%s367 + $0x10] sm:$0xff]
        %v397 = vld [vmem:[%s367 + $0x18] sm:$0xff]
        %v398 = vld [vmem:[%s367 + $0x20] sm:$0xff]
        %v399 = vld [vmem:[%s367 + $0x28] sm:$0xff]
        %v400 = vld [vmem:[%s367 + $0x30] sm:$0xff]
        %v401 = vld [vmem:[%s367 + $0x38] sm:$0xff]
        %v402 = vperm.slane %v393, 0
        %v403 = vmul.f32 %v394, %v402
        %v404 = vmul.f32 %v395, %v402
        %v405 = vmul.f32 %v396, %v402
        %v406 = vmul.f32 %v397, %v402
        %v407 = vmul.f32 %v398, %v402
        %v408 = vmul.f32 %v399, %v402
        %v409 = vmul.f32 %v400, %v402
        %v410 = vmul.f32 %v401, %v402
        %v411 = vperm.slane %v393, 1
        %v412 = vadd.f32 %v403, %v411
        %v413 = vadd.f32 %v404, %v411
        %v414 = vadd.f32 %v405, %v411
        %v415 = vadd.f32 %v406, %v411
        %v416 = vadd.f32 %v407, %v411
        %v417 = vadd.f32 %v408, %v411
        %v418 = vadd.f32 %v409, %v411
        %v419 = vadd.f32 %v410, %v411
        %v420 = vpack.c.bf16 %v413, %v412
        %v421 = vpack.c.bf16 %v415, %v414
        %v422 = vpack.c.bf16 %v417, %v416
        %v423 = vpack.c.bf16 %v419, %v418
        %v424 = vld [vmem:[#allocation2] sm:$0xf]
        %v425 = vld [vmem:[#allocation2 + $0x4] sm:$0xf]
        %v426 = vld [vmem:[#allocation2 + $0x8] sm:$0xf]
        %v427 = vld [vmem:[#allocation2 + $0xc] sm:$0xf]
        %v428 = vld [vmem:[#allocation2 + $0x10] sm:$0xf]
        %v429 = vld [vmem:[#allocation2 + $0x14] sm:$0xf]
        %v430 = vld [vmem:[#allocation2 + $0x18] sm:$0xf]
        %v431 = vld [vmem:[#allocation2 + $0x1c] sm:$0xf]
        %v432 = vld [vmem:[#allocation2 + $0x20] sm:$0xf]
        %v433 = vld [vmem:[#allocation2 + $0x24] sm:$0xf]
        %v434 = vld [vmem:[#allocation2 + $0x28] sm:$0xf]
        %v435 = vld [vmem:[#allocation2 + $0x2c] sm:$0xf]
        %v436 = vld [vmem:[#allocation2 + $0x30] sm:$0xf]
        %v437 = vld [vmem:[#allocation2 + $0x34] sm:$0xf]
        %v438 = vld [vmem:[#allocation2 + $0x38] sm:$0xf]
        %v439 = vld [vmem:[#allocation2 + $0x3c] sm:$0xf]
        %v440 = vld [vmem:[%s4] sm:$0x1]
        %v442 = vperm.slane %v440, 0
        %v460 = vunpack.c.l.b16 %v424
        %v461 = vunpack.c.l.b16 %v425
        %v462 = vunpack.c.l.b16 %v426
        %v463 = vunpack.c.l.b16 %v427
        %v464 = vunpack.c.l.b16 %v428
        %v465 = vunpack.c.l.b16 %v429
        %v466 = vunpack.c.l.b16 %v430
        %v467 = vunpack.c.l.b16 %v431
        %v468 = vunpack.c.l.b16 %v432
        %v469 = vunpack.c.l.b16 %v433
        %v470 = vunpack.c.l.b16 %v434
        %v471 = vunpack.c.l.b16 %v435
        %v472 = vunpack.c.l.b16 %v436
        %v473 = vunpack.c.l.b16 %v437
        %v474 = vunpack.c.l.b16 %v438
        %v475 = vunpack.c.l.b16 %v439
        %v476 = vpack.c.b16 %v461, %v460
        %v477 = vpack.c.b16 %v463, %v462
        %v478 = vpack.c.b16 %v465, %v464
        %v479 = vpack.c.b16 %v467, %v466
        %v480 = vpack.c.b16 %v469, %v468
        %v481 = vpack.c.b16 %v471, %v470
        %v482 = vpack.c.b16 %v473, %v472
        %v483 = vpack.c.b16 %v475, %v474
        %492 = vmatpush.bf16.msra.mxu0 %v483
        %493 = vmatpush.bf16.msra.mxu0 %v482
        %494 = vmatpush.bf16.msra.mxu0 %v481
        %495 = vmatpush.bf16.msra.mxu0 %v480
        %496 = vmatpush.bf16.msra.mxu0 %v479
        %497 = vmatpush.bf16.msra.mxu0 %v478
        %498 = vmatpush.bf16.msra.mxu0 %v477
        %499 = vmatpush.bf16.msra.mxu0 %v476
        %500 = vmatmul.bf16.gmra.mxu0 %v420
        %v501 = vpop.f32.mrf.mxu0
        %v502 = vadd.f32 %v442, %v501
        %v503 = vpop.f32.mrf.mxu0
        %v504 = vadd.f32 %v442, %v503
        %505 = vmatmul.bf16.gmra.mxu0 %v421
        %v506 = vpop.f32.mrf.mxu0
        %v507 = vadd.f32 %v442, %v506
        %v508 = vpop.f32.mrf.mxu0
        %v509 = vadd.f32 %v442, %v508
        %510 = vmatmul.bf16.gmra.mxu0 %v422
        %v511 = vpop.f32.mrf.mxu0
        %v512 = vadd.f32 %v442, %v511
        %v513 = vpop.f32.mrf.mxu0
        %v514 = vadd.f32 %v442, %v513
        %515 = vmatmul.bf16.gmra.mxu0 %v423
        %v516 = vpop.f32.mrf.mxu0
        %v517 = vadd.f32 %v442, %v516
        %v518 = vpop.f32.mrf.mxu0
        %v519 = vadd.f32 %v442, %v518
        %520 = vdwg.mxu0
        %v521 = vld [vmem:[#allocation4] sm:$0xf]
        %v522 = vld [vmem:[#allocation4 + $0x4] sm:$0xf]
        %v523 = vld [vmem:[#allocation4 + $0x8] sm:$0xf]
        %v524 = vld [vmem:[#allocation4 + $0xc] sm:$0xf]
        %v525 = vld [vmem:[#allocation4 + $0x10] sm:$0xf]
        %v526 = vld [vmem:[#allocation4 + $0x14] sm:$0xf]
        %v527 = vld [vmem:[#allocation4 + $0x18] sm:$0xf]
        %v528 = vld [vmem:[#allocation4 + $0x1c] sm:$0xf]
        %v529 = vld [vmem:[#allocation4 + $0x20] sm:$0xf]
        %v530 = vld [vmem:[#allocation4 + $0x24] sm:$0xf]
        %v531 = vld [vmem:[#allocation4 + $0x28] sm:$0xf]
        %v532 = vld [vmem:[#allocation4 + $0x2c] sm:$0xf]
        %v533 = vld [vmem:[#allocation4 + $0x30] sm:$0xf]
        %v534 = vld [vmem:[#allocation4 + $0x34] sm:$0xf]
        %v535 = vld [vmem:[#allocation4 + $0x38] sm:$0xf]
        %v536 = vld [vmem:[#allocation4 + $0x3c] sm:$0xf]
        %v537 = vld [vmem:[%s5] sm:$0x1]
        %v539 = vperm.slane %v537, 0
        %v557 = vunpack.c.l.b16 %v521
        %v558 = vunpack.c.l.b16 %v522
        %v559 = vunpack.c.l.b16 %v523
        %v560 = vunpack.c.l.b16 %v524
        %v561 = vunpack.c.l.b16 %v525
        %v562 = vunpack.c.l.b16 %v526
        %v563 = vunpack.c.l.b16 %v527
        %v564 = vunpack.c.l.b16 %v528
        %v565 = vunpack.c.l.b16 %v529
        %v566 = vunpack.c.l.b16 %v530
        %v567 = vunpack.c.l.b16 %v531
        %v568 = vunpack.c.l.b16 %v532
        %v569 = vunpack.c.l.b16 %v533
        %v570 = vunpack.c.l.b16 %v534
        %v571 = vunpack.c.l.b16 %v535
        %v572 = vunpack.c.l.b16 %v536
        %v573 = vpack.c.b16 %v558, %v557
        %v574 = vpack.c.b16 %v560, %v559
        %v575 = vpack.c.b16 %v562, %v561
        %v576 = vpack.c.b16 %v564, %v563
        %v577 = vpack.c.b16 %v566, %v565
        %v578 = vpack.c.b16 %v568, %v567
        %v579 = vpack.c.b16 %v570, %v569
        %v580 = vpack.c.b16 %v572, %v571
        %589 = vmatpush.bf16.msra.mxu0 %v580
        %590 = vmatpush.bf16.msra.mxu0 %v579
        %591 = vmatpush.bf16.msra.mxu0 %v578
        %592 = vmatpush.bf16.msra.mxu0 %v577
        %593 = vmatpush.bf16.msra.mxu0 %v576
        %594 = vmatpush.bf16.msra.mxu0 %v575
        %595 = vmatpush.bf16.msra.mxu0 %v574
        %596 = vmatpush.bf16.msra.mxu0 %v573
        %597 = vmatmul.bf16.gmra.mxu0 %v420
        %v598 = vpop.f32.mrf.mxu0
        %v599 = vadd.f32 %v539, %v598
        %v600 = vpop.f32.mrf.mxu0
        %v601 = vadd.f32 %v539, %v600
        %602 = vmatmul.bf16.gmra.mxu0 %v421
        %v603 = vpop.f32.mrf.mxu0
        %v604 = vadd.f32 %v539, %v603
        %v605 = vpop.f32.mrf.mxu0
        %v606 = vadd.f32 %v539, %v605
        %607 = vmatmul.bf16.gmra.mxu0 %v422
        %v608 = vpop.f32.mrf.mxu0
        %v609 = vadd.f32 %v539, %v608
        %v610 = vpop.f32.mrf.mxu0
        %v611 = vadd.f32 %v539, %v610
        %612 = vmatmul.bf16.gmra.mxu0 %v423
        %v613 = vpop.f32.mrf.mxu0
        %v614 = vadd.f32 %v539, %v613
        %v615 = vpop.f32.mrf.mxu0
        %v616 = vadd.f32 %v539, %v615
        %617 = vdwg.mxu0
        %v618 = vpack.c.bf16 %v502, %v502
        %v619 = vpack.c.bf16 %v504, %v504
        %v620 = vpack.c.bf16 %v507, %v507
        %v621 = vpack.c.bf16 %v509, %v509
        %v622 = vpack.c.bf16 %v512, %v512
        %v623 = vpack.c.bf16 %v514, %v514
        %v624 = vpack.c.bf16 %v517, %v517
        %v625 = vpack.c.bf16 %v519, %v519
        %626 = vst [vmem:[%s381] sm:$0xf] %v618
        %627 = vst [vmem:[%s381 + $0x4] sm:$0xf] %v619
        %628 = vst [vmem:[%s381 + $0x8] sm:$0xf] %v620
        %629 = vst [vmem:[%s381 + $0xc] sm:$0xf] %v621
        %630 = vst [vmem:[%s381 + $0x10] sm:$0xf] %v622
        %631 = vst [vmem:[%s381 + $0x14] sm:$0xf] %v623
        %632 = vst [vmem:[%s381 + $0x18] sm:$0xf] %v624
        %633 = vst [vmem:[%s381 + $0x1c] sm:$0xf] %v625
        %v634 = vpack.c.bf16 %v599, %v599
        %v635 = vpack.c.bf16 %v601, %v601
        %v636 = vpack.c.bf16 %v604, %v604
        %v637 = vpack.c.bf16 %v606, %v606
        %v638 = vpack.c.bf16 %v609, %v609
        %v639 = vpack.c.bf16 %v611, %v611
        %v640 = vpack.c.bf16 %v614, %v614
        %v641 = vpack.c.bf16 %v616, %v616
        %642 = vst [vmem:[%s391] sm:$0xf] %v634
        %643 = vst [vmem:[%s391 + $0x4] sm:$0xf] %v635
        %644 = vst [vmem:[%s391 + $0x8] sm:$0xf] %v636
        %645 = vst [vmem:[%s391 + $0xc] sm:$0xf] %v637
        %646 = vst [vmem:[%s391 + $0x10] sm:$0xf] %v638
        %647 = vst [vmem:[%s391 + $0x14] sm:$0xf] %v639
        %648 = vst [vmem:[%s391 + $0x18] sm:$0xf] %v640
        %649 = vst [vmem:[%s391 + $0x1c] sm:$0xf] %v641
        %s650 = smul.u32 8, %s26
        %p651 = scmp.lt.s32.totalorder %s25, 1
        %s652 = scalar_select %p651, %s25, 1
        %p653 = scmp.lt.s32.totalorder %s650, 7
        %s654 = scalar_select %p653, %s650, 7
        %s655 = smul.addr %s652, 8
        %s656 = sadd.s32 %s654, %s655
        %s657 = smul.addr %s656, 4
        %s658 = scalar_lea.vmem %s6, %s657
        %s659 = smul.u32 8, %s26
        %p660 = scmp.lt.s32.totalorder %s25, 1
        %s661 = scalar_select %p660, %s25, 1
        %p662 = scmp.lt.s32.totalorder %s659, 7
        %s663 = scalar_select %p662, %s659, 7
        %s664 = smul.addr %s661, 8
        %s665 = sadd.s32 %s663, %s664
        %s666 = smul.addr %s665, 4
        %s667 = scalar_lea.vmem %s7, %s666
        // Predicated region
        $region53: #{self_attention_block.4} parent=43 // pred_check
          %p668 = pneg %p191
        $region54: #{self_attention_block.4} parent=43 // pred_check_branch
          %670 = sbr.rel (%p668) target = $region56
        $region55: #{self_attention_block.4} parent=43 // pred_region
          %s671 = smul.u32 8, %s26
        $region56: #{self_attention_block.4} parent=43 // pred_fallthru
          _
        // Predicated region
        $region57: #{self_attention_block.4} parent=43 // pred_check
          %p672 = pneg %p219
        $region58: #{self_attention_block.4} parent=43 // pred_check_branch
          %674 = sbr.rel (%p672) target = $region60
        $region59: #{self_attention_block.4} parent=43 // pred_region
          %s675 = smul.u32 8, %s26
        $region60: #{self_attention_block.4} parent=43 // pred_fallthru
          _
      $region44: #{self_attention_block.4} parent=5 // pred_fallthru
        _
      %p676 = scmp.le.s32.totalorder 2, %s16
      // Predicated region
      $region61: #{self_attention_block.4} parent=5 // pred_check
        %p677 = pneg %p676
      $region62: #{self_attention_block.4} parent=5 // pred_check_branch
        %679 = sbr.rel (%p677) target = $region64
      $region63: #{self_attention_block.4} parent=5 // pred_region
        %s680 = ssub.s32 %s16, 2
        // Predicated region
        $region65: #{self_attention_block.4} parent=63 // pred_check
          %p681 = pneg %p197
        $region66: #{self_attention_block.4} parent=63 // pred_check_branch
          %683 = sbr.rel (%p681) target = $region68
        $region67: #{self_attention_block.4} parent=63 // pred_region
          %s684 = smul.u32 8, %s28
          %p685 = scmp.lt.s32.totalorder %s27, 1
          %s686 = scalar_select %p685, %s27, 1
          %p687 = scmp.lt.s32.totalorder %s684, 7
          %s688 = scalar_select %p687, %s684, 7
          %s689 = smul.addr %s686, 8
          %s690 = sadd.s32 %s688, %s689
          %s691 = smul.addr %s690, 4
          %s692 = scalar_lea.vmem %s6, %s691
        $region68: #{self_attention_block.4} parent=63 // pred_fallthru
          _
        // Predicated region
        $region69: #{self_attention_block.4} parent=63 // pred_check
          %p693 = pneg %p225
        $region70: #{self_attention_block.4} parent=63 // pred_check_branch
          %695 = sbr.rel (%p693) target = $region72
        $region71: #{self_attention_block.4} parent=63 // pred_region
          %s696 = smul.u32 8, %s28
          %p697 = scmp.lt.s32.totalorder %s27, 1
          %s698 = scalar_select %p697, %s27, 1
          %p699 = scmp.lt.s32.totalorder %s696, 7
          %s700 = scalar_select %p699, %s696, 7
          %s701 = smul.addr %s698, 8
          %s702 = sadd.s32 %s700, %s701
          %s703 = smul.addr %s702, 4
          %s704 = scalar_lea.vmem %s7, %s703
        $region72: #{self_attention_block.4} parent=63 // pred_fallthru
          _
      $region64: #{self_attention_block.4} parent=5 // pred_fallthru
        _
    $region6: #{self_attention_block.4} parent=1 // loop_footer
      %s20 = sadd.s32 1, %s16
    $region7: #{self_attention_block.4} parent=1 // loop_footer_branch
      %15 = sbr.rel target = $region3
    $region8: #{self_attention_block.4} parent=1 // loop_exit
      _
    %705 = vsyncpa [#allocation3], 1
    %s706 = scalar_lea.sflag [#allocation3], 1
    %707 = vsyncpa %s706, 1
    %708 = vsyncpa [#allocation5], 1

// kernel: self_attention_block.3
$region0: #{self_attention_block.3}
  #allocation0 [shape = 'u32[]', space=smem, size = 0x4, offset = 0x4, fixed_abs, tag = 'smem constant byte address 0x4 - core index']
  #allocation1 [shape = 'u32[72,128]{1,0:T(1,128)}', space=vmem, size = 0x9000, scoped, tag = 'internal scratch']
  #allocation2 [shape = 'f32[2,128]{1,0:T(2,128)}', space=vmem, size = 0x400, scoped, tag = 'scratch operand']
  %s0 = inlined_call_operand.vmem [shape: f32[2,64,128], index: 0, kind: input, shape index: {}]
  %s1 = inlined_call_operand.vmem [shape: f32[1,128], index: 1, kind: input, shape index: {}]
  %s2 = inlined_call_operand.vmem [shape: f32[1,128], index: 2, kind: input, shape index: {}]
  %s3 = inlined_call_operand.vmem [shape: f32[128,32], index: 3, kind: input, shape index: {}]
  %s4 = inlined_call_operand.vmem [shape: f32[2,2,128], index: 4, kind: output, shape index: {}]
  %s5 = sld [smem:[#allocation0]]
  $region57: #{self_attention_block.3} parent=0
    _
  %s7 = ssub.s32 1, %s5
  %s8 = scalar_select 0, %s7, %s5
  loop: start=0, step=1, limit=4
  $region2: #{self_attention_block.3} parent=0 // loop_pre_header
    _
  $region3: #{self_attention_block.3} parent=0 // loop_header
    %s10 = sphi 0, %s14
    %p11 = scmp.ge.s32.totalorder %s10, 4
    %s17 = sphi 0, %s29
    %s18 = sphi 0, %s25
    %s19 = sphi 0, %s17
    %s20 = sphi 0, %s18
    %s21 = sphi 0, %s19
    %s22 = sphi 0, %s20
    %s34 = sphi 0, %s36
    %s37 = sphi 0, %s34
    %s38 = sphi 0, %s37
    %s54 = sphi 0, %s38
    %s58 = sphi 0, %s58
    %s60 = sphi 0, %s58
    %s61 = sphi 0, %s60
    %s75 = sphi 0, %s61
    %s79 = sphi 0, %s79
    %s81 = sphi 0, %s79
    %s82 = sphi 0, %s81
    %s96 = sphi 0, %s82
    %s100 = sphi 0, %s100
    %s102 = sphi 0, %s100
    %s103 = sphi 0, %s102
    %s117 = sphi 0, %s103
    %s123 = sphi 0, %s125
    %s126 = sphi 0, %s123
    %s127 = sphi 0, %s126
    %s143 = sphi 0, %s127
  $region4: #{self_attention_block.3} parent=0 // loop_header_branch
    %13 = sbr.rel (%p11) target = $region8
  $region5: #{self_attention_block.3} parent=0 // loop_body
    %s15 = ssub.s32 %s10, 1
    %s16 = ssub.s32 %s10, 2
    %s23 = sadd.s32 1, %s18
    %p24 = scmp.ge.s32.totalorder %s23, 1
    %s25 = scalar_select %p24, 0, %s23
    %s26 = sadd.s32 1, %s17
    %s27 = scalar_select %p24, %s26, %s17
    %p28 = scmp.ge.s32.totalorder %s27, 2
    %s29 = scalar_select %p28, 0, %s27
    %s30 = ssub.s32 %s17, %s29
    %s31 = ssub.s32 %s18, %s25
    %s32 = sor.u32 %s30, %s31
    %p33 = scmp.eq.s32.totalorder %s32, 0
    %s35 = sadd.s32 %s34, 1
    %s36 = scalar_select %p33, %s34, %s35
    %p39 = pneg %p33
    %p40 = scmp.eq.s32.totalorder %s10, 1
    %p41 = por %p39, %p40
    %p42 = scmp.ne.s32.totalorder %s34, %s37
    %p43 = scmp.eq.s32.totalorder %s10, 0
    %p44 = por %p42, %p43
    %p45 = scmp.ne.s32.totalorder %s34, %s37
    %p46 = scmp.eq.s32.totalorder %s15, 1
    %p47 = por %p45, %p46
    %p48 = scmp.ne.s32.totalorder %s37, %s38
    %p49 = scmp.eq.s32.totalorder %s15, 0
    %p50 = por %p48, %p49
    %p51 = scmp.ne.s32.totalorder %s37, %s38
    %p52 = scmp.eq.s32.totalorder %s16, 1
    %p53 = por %p51, %p52
    %p55 = scmp.ne.s32.totalorder %s38, %s54
    %p56 = scmp.eq.s32.totalorder %s16, 0
    %p57 = por %p55, %p56
    %s59 = sadd.s32 %s58, 1
    %p62 = scmp.eq.s32.totalorder %s10, 1
    %p63 = scmp.ne.s32.totalorder %s58, %s60
    %p64 = scmp.eq.s32.totalorder %s10, 0
    %p65 = por %p63, %p64
    %p66 = scmp.ne.s32.totalorder %s58, %s60
    %p67 = scmp.eq.s32.totalorder %s15, 1
    %p68 = por %p66, %p67
    %p69 = scmp.ne.s32.totalorder %s60, %s61
    %p70 = scmp.eq.s32.totalorder %s15, 0
    %p71 = por %p69, %p70
    %p72 = scmp.ne.s32.totalorder %s60, %s61
    %p73 = scmp.eq.s32.totalorder %s16, 1
    %p74 = por %p72, %p73
    %p76 = scmp.ne.s32.totalorder %s61, %s75
    %p77 = scmp.eq.s32.totalorder %s16, 0
    %p78 = por %p76, %p77
    %s80 = sadd.s32 %s79, 1
    %p83 = scmp.eq.s32.totalorder %s10, 1
    %p84 = scmp.ne.s32.totalorder %s79, %s81
    %p85 = scmp.eq.s32.totalorder %s10, 0
    %p86 = por %p84, %p85
    %p87 = scmp.ne.s32.totalorder %s79, %s81
    %p88 = scmp.eq.s32.totalorder %s15, 1
    %p89 = por %p87, %p88
    %p90 = scmp.ne.s32.totalorder %s81, %s82
    %p91 = scmp.eq.s32.totalorder %s15, 0
    %p92 = por %p90, %p91
    %p93 = scmp.ne.s32.totalorder %s81, %s82
    %p94 = scmp.eq.s32.totalorder %s16, 1
    %p95 = por %p93, %p94
    %p97 = scmp.ne.s32.totalorder %s82, %s96
    %p98 = scmp.eq.s32.totalorder %s16, 0
    %p99 = por %p97, %p98
    %s101 = sadd.s32 %s100, 1
    %p104 = scmp.eq.s32.totalorder %s10, 1
    %p105 = scmp.ne.s32.totalorder %s100, %s102
    %p106 = scmp.eq.s32.totalorder %s10, 0
    %p107 = por %p105, %p106
    %p108 = scmp.ne.s32.totalorder %s100, %s102
    %p109 = scmp.eq.s32.totalorder %s15, 1
    %p110 = por %p108, %p109
    %p111 = scmp.ne.s32.totalorder %s102, %s103
    %p112 = scmp.eq.s32.totalorder %s15, 0
    %p113 = por %p111, %p112
    %p114 = scmp.ne.s32.totalorder %s102, %s103
    %p115 = scmp.eq.s32.totalorder %s16, 1
    %p116 = por %p114, %p115
    %p118 = scmp.ne.s32.totalorder %s103, %s117
    %p119 = scmp.eq.s32.totalorder %s16, 0
    %p120 = por %p118, %p119
    %s121 = ssub.s32 %s17, %s29
    %p122 = scmp.eq.s32.totalorder %s121, 0
    %s124 = sadd.s32 %s123, 1
    %s125 = scalar_select %p122, %s123, %s124
    %p128 = pneg %p122
    %p129 = scmp.eq.s32.totalorder %s10, 1
    %p130 = por %p128, %p129
    %p131 = scmp.ne.s32.totalorder %s123, %s126
    %p132 = scmp.eq.s32.totalorder %s10, 0
    %p133 = por %p131, %p132
    %p134 = scmp.ne.s32.totalorder %s123, %s126
    %p135 = scmp.eq.s32.totalorder %s15, 1
    %p136 = por %p134, %p135
    %p137 = scmp.ne.s32.totalorder %s126, %s127
    %p138 = scmp.eq.s32.totalorder %s15, 0
    %p139 = por %p137, %p138
    %p140 = scmp.ne.s32.totalorder %s126, %s127
    %p141 = scmp.eq.s32.totalorder %s16, 1
    %p142 = por %p140, %p141
    %p144 = scmp.ne.s32.totalorder %s127, %s143
    %p145 = scmp.eq.s32.totalorder %s16, 0
    %p146 = por %p144, %p145
    %p147 = scmp.le.s32.totalorder 1, %s10
    %p148 = scmp.lt.s32.totalorder %s10, 3
    %p149 = pnand %p147, %p148
    %p150 = pneg %p149
    // Predicated region
    $region9: #{self_attention_block.3} parent=5 // pred_check
      _
    $region10: #{self_attention_block.3} parent=5 // pred_check_branch
      %152 = sbr.rel (%p149) target = $region12
    $region11: #{self_attention_block.3} parent=5 // pred_region
      %s153 = ssub.s32 %s10, 1
      // Predicated region
      $region13: #{self_attention_block.3} parent=11 // pred_check
        %p154 = pneg %p71
      $region14: #{self_attention_block.3} parent=11 // pred_check_branch
        %156 = sbr.rel (%p154) target = $region16
      $region15: #{self_attention_block.3} parent=11 // pred_region
        _
      $region16: #{self_attention_block.3} parent=11 // pred_fallthru
        _
      // Predicated region
      $region17: #{self_attention_block.3} parent=11 // pred_check
        %p157 = pneg %p92
      $region18: #{self_attention_block.3} parent=11 // pred_check_branch
        %159 = sbr.rel (%p157) target = $region20
      $region19: #{self_attention_block.3} parent=11 // pred_region
        _
      $region20: #{self_attention_block.3} parent=11 // pred_fallthru
        _
      // Predicated region
      $region21: #{self_attention_block.3} parent=11 // pred_check
        %p160 = pneg %p113
      $region22: #{self_attention_block.3} parent=11 // pred_check_branch
        %162 = sbr.rel (%p160) target = $region24
      $region23: #{self_attention_block.3} parent=11 // pred_region
        _
      $region24: #{self_attention_block.3} parent=11 // pred_fallthru
        _
    $region12: #{self_attention_block.3} parent=5 // pred_fallthru
      _
    %p163 = scmp.lt.s32.totalorder %s10, 2
    // Predicated region
    $region25: #{self_attention_block.3} parent=5 // pred_check
      %p164 = pneg %p163
    $region26: #{self_attention_block.3} parent=5 // pred_check_branch
      %166 = sbr.rel (%p164) target = $region28
    $region27: #{self_attention_block.3} parent=5 // pred_region
      // Predicated region
      $region29: #{self_attention_block.3} parent=27 // pred_check
        %p167 = pneg %p44
      $region30: #{self_attention_block.3} parent=27 // pred_check_branch
        %169 = sbr.rel (%p167) target = $region32
      $region31: #{self_attention_block.3} parent=27 // pred_region
        %s170 = smul.u32 8, %s18
        %p171 = scmp.lt.s32.totalorder %s17, 1
        %s172 = scalar_select %p171, %s17, 1
        %p173 = scmp.lt.s32.totalorder %s170, 7
        %s174 = scalar_select %p173, %s170, 7
        %s175 = smul.addr %s172, 8
        %s176 = sadd.s32 %s174, %s175
        %s177 = smul.addr %s176, 8
        %s178 = scalar_lea.vmem %s0, %s177
        %s179 = smul.u32 8, %s18
      $region32: #{self_attention_block.3} parent=27 // pred_fallthru
        _
    $region28: #{self_attention_block.3} parent=5 // pred_fallthru
      _
    %p180 = scmp.le.s32.totalorder 1, %s10
    %p181 = scmp.lt.s32.totalorder %s10, 3
    %p182 = pnand %p180, %p181
    %p183 = pneg %p182
    // Predicated region
    $region33: #{self_attention_block.3} parent=5 // pred_check
      _
    $region34: #{self_attention_block.3} parent=5 // pred_check_branch
      %185 = sbr.rel (%p182) target = $region36
    $region35: #{self_attention_block.3} parent=5 // pred_region
      %s186 = ssub.s32 %s10, 1
      %s187 = smul.u32 8, %s20
      %p188 = scmp.lt.s32.totalorder %s19, 1
      %s189 = scalar_select %p188, %s19, 1
      %p190 = scmp.lt.s32.totalorder %s187, 7
      %s191 = scalar_select %p190, %s187, 7
      %s192 = smul.addr %s189, 8
      %s193 = sadd.s32 %s191, %s192
      %s194 = smul.addr %s193, 8
      %s195 = scalar_lea.vmem %s0, %s194
      %p196 = pneg %p50
      %p197 = pneg %p47
      %p198 = pneg %p71
      %p199 = pneg %p68
      %p200 = pneg %p92
      %p201 = pneg %p89
      %p202 = pneg %p113
      %p203 = pneg %p110
      %p204 = pneg %p139
      %p205 = pneg %p136
      %p206 = scmp.lt.s32.totalorder %s19, 1
      %s207 = scalar_select %p206, %s19, 1
      %s208 = smul.addr %s207, 2
      %s209 = scalar_lea.vmem %s4, %s208
      %s210 = smul.u32 8, %s20
      %p211 = scmp.lt.s32.totalorder %s19, 1
      %s212 = scalar_select %p211, %s19, 1
      %p213 = scmp.lt.s32.totalorder %s210, 7
      %s214 = scalar_select %p213, %s210, 7
      %s215 = smul.addr %s212, 8
      %s216 = sadd.s32 %s214, %s215
      %s217 = smul.addr %s216, 8
      %s218 = scalar_lea.vmem %s0, %s217
      %s219 = smul.u32 8, %s20
      %p220 = scmp.lt.s32.totalorder %s19, 1
      %s221 = scalar_select %p220, %s19, 1
      %s222 = smul.addr %s221, 2
      %s223 = scalar_lea.vmem %s4, %s222
      %v224 = vld [vmem:[%s218] sm:$0xff]
      %v225 = vld [vmem:[%s218 + $0x8] sm:$0xff]
      %v226 = vld [vmem:[%s218 + $0x10] sm:$0xff]
      %v227 = vld [vmem:[%s218 + $0x18] sm:$0xff]
      %v228 = vld [vmem:[%s218 + $0x20] sm:$0xff]
      %v229 = vld [vmem:[%s218 + $0x28] sm:$0xff]
      %v230 = vld [vmem:[%s218 + $0x30] sm:$0xff]
      %v231 = vld [vmem:[%s218 + $0x38] sm:$0xff]
      %p232 = scmp.eq.s32.totalorder %s20, 0
      // Predicated region
      $region37: #{self_attention_block.3} parent=35 // pred_check
        %p233 = pneg %p232
      $region38: #{self_attention_block.3} parent=35 // pred_check_branch
        %235 = sbr.rel (%p233) target = $region40
      $region39: #{self_attention_block.3} parent=35 // pred_region
        %236 = vst [vmem:[#allocation2] sm:$0x3] 0.0
      $region40: #{self_attention_block.3} parent=35 // pred_fallthru
        _
      %v237 = vadd.f32 %v224, %v225
      %v238 = vadd.f32 %v237, %v226
      %v239 = vadd.f32 %v238, %v227
      %v240 = vadd.f32 %v239, %v228
      %v241 = vadd.f32 %v240, %v229
      %v242 = vadd.f32 %v241, %v230
      %v243 = vadd.f32 %v242, %v231
      %v244 = vrot.slane %v243, 4
      %v245 = vadd.f32 %v243, %v244
      %v246 = vrot.slane %v245, 2
      %v247 = vadd.f32 %v245, %v246
      %v248 = vrot.slane %v247, 1
      %v249 = vadd.f32 %v247, %v248
      %v250 = vmul.f32 %v224, %v224
      %v251 = vmul.f32 %v225, %v225
      %v252 = vmul.f32 %v226, %v226
      %v253 = vmul.f32 %v227, %v227
      %v254 = vmul.f32 %v228, %v228
      %v255 = vmul.f32 %v229, %v229
      %v256 = vmul.f32 %v230, %v230
      %v257 = vmul.f32 %v231, %v231
      %v258 = vadd.f32 %v250, %v251
      %v259 = vadd.f32 %v258, %v252
      %v260 = vadd.f32 %v259, %v253
      %v261 = vadd.f32 %v260, %v254
      %v262 = vadd.f32 %v261, %v255
      %v263 = vadd.f32 %v262, %v256
      %v264 = vadd.f32 %v263, %v257
      %v265 = vrot.slane %v264, 4
      %v266 = vadd.f32 %v264, %v265
      %v267 = vrot.slane %v266, 2
      %v268 = vadd.f32 %v266, %v267
      %v269 = vrot.slane %v268, 1
      %v270 = vadd.f32 %v268, %v269
      %vm271 = vcmask 1040384
      %v272 = vsel %vm271, %v249, %v270
      %v273 = vld [vmem:[#allocation2] sm:$0x3]
      %v274 = vadd.f32 %v273, %v272
      %275 = vst [vmem:[#allocation2] sm:$0x3] %v274
      // Predicated region
      $region41: #{self_attention_block.3} parent=35 // pred_check
        %p276 = pneg %p232
      $region42: #{self_attention_block.3} parent=35 // pred_check_branch
        %278 = sbr.rel (%p276) target = $region44
      $region43: #{self_attention_block.3} parent=35 // pred_region
        %v279 = vld [vmem:[%s3] sm:$0xff]
        %v280 = vld [vmem:[%s3 + $0x8] sm:$0xff]
        %v281 = vld [vmem:[%s3 + $0x10] sm:$0xff]
        %v282 = vld [vmem:[%s3 + $0x18] sm:$0xff]
        %v283 = vld [vmem:[%s3 + $0x20] sm:$0xff]
        %v284 = vld [vmem:[%s3 + $0x28] sm:$0xff]
        %v285 = vld [vmem:[%s3 + $0x30] sm:$0xff]
        %v286 = vld [vmem:[%s3 + $0x38] sm:$0xff]
        %v287 = vld [vmem:[%s3 + $0x40] sm:$0xff]
        %v288 = vld [vmem:[%s3 + $0x48] sm:$0xff]
        %v289 = vld [vmem:[%s3 + $0x50] sm:$0xff]
        %v290 = vld [vmem:[%s3 + $0x58] sm:$0xff]
        %v291 = vld [vmem:[%s3 + $0x60] sm:$0xff]
        %v292 = vld [vmem:[%s3 + $0x68] sm:$0xff]
        %v293 = vld [vmem:[%s3 + $0x70] sm:$0xff]
        %v294 = vld [vmem:[%s3 + $0x78] sm:$0xff]
        %v295 = vld [vmem:[#allocation2] sm:$0x3]
        %296 = vmatpush.msra.mxu0 %v294
        %297 = vmatpush.msra.mxu0 %v293
        %298 = vmatpush.msra.mxu0 %v292
        %299 = vmatpush.msra.mxu0 %v291
        %300 = vmatpush.msra.mxu0 %v290
        %301 = vmatpush.msra.mxu0 %v289
        %302 = vmatpush.msra.mxu0 %v288
        %303 = vmatpush.msra.mxu0 %v287
        %304 = vmatpush.msra.mxu0 %v286
        %305 = vmatpush.msra.mxu0 %v285
        %306 = vmatpush.msra.mxu0 %v284
        %307 = vmatpush.msra.mxu0 %v283
        %308 = vmatpush.msra.mxu0 %v282
        %309 = vmatpush.msra.mxu0 %v281
        %310 = vmatpush.msra.mxu0 %v280
        %311 = vmatpush.msra.mxu0 %v279
        %312 = vmatmul.f32.gmra.mxu0 %v295
        %v313 = vpop.f32.mrf.mxu0
        %v314 = vadd.f32 0.0, %v313
        %315 = vdwg.mxu0
        %v316 = vmul.f32 %v314, 0.00390625
        %v317 = vmul.f32 %v316, %v316
        %v319 = vrot.slane %v317, 7
        %v321 = vsub.f32 %v316, %v319
        %v322 = vmax.f32 %v321, 0.0
        %v323 = vadd.f32 %v322, 1e-05
        %v324 = vrsqrt.pop %v323
        %v325 = vmul.f32 %v324, %v323
        %v326 = vmul.f32 %v325, %v324
        %v327 = vmul.f32 0.5, %v326
        %v328 = vsub.f32 1.5, %v327
        %v329 = vmul.f32 %v324, %v328
        %vm330 = vweird.f32 %v323
        %vm331 = vweird.f32 %v324
        %vm332 = vmor %vm330, %vm331
        %v333 = vsel %vm332, %v324, %v329
        %v334 = vsel %vm271, %v316, %v333
        %vm335 = vcmask 261120
        %v337 = vsel %vm335, %v334, 0
        %v340 = vsel %vm335, %v279, 0
        %v343 = vsel %vm335, %v280, 0
        %v346 = vsel %vm335, %v281, 0
        %v349 = vsel %vm335, %v282, 0
        %v352 = vsel %vm335, %v283, 0
        %v355 = vsel %vm335, %v284, 0
        %v358 = vsel %vm335, %v285, 0
        %v361 = vsel %vm335, %v286, 0
        %v364 = vsel %vm335, %v287, 0
        %v367 = vsel %vm335, %v288, 0
        %v370 = vsel %vm335, %v289, 0
        %v373 = vsel %vm335, %v290, 0
        %v376 = vsel %vm335, %v291, 0
        %v379 = vsel %vm335, %v292, 0
        %v382 = vsel %vm335, %v293, 0
        %v385 = vsel %vm335, %v294, 0
        %387 = vmatpush.xpose.msra.mxu0 %v385
        %388 = vmatpush.xpose.msra.mxu0 %v382
        %389 = vmatpush.xpose.msra.mxu0 %v379
        %390 = vmatpush.xpose.msra.mxu0 %v376
        %391 = vmatpush.xpose.msra.mxu0 %v373
        %392 = vmatpush.xpose.msra.mxu0 %v370
        %393 = vmatpush.xpose.msra.mxu0 %v367
        %394 = vmatpush.xpose.msra.mxu0 %v364
        %395 = vmatpush.xpose.msra.mxu0 %v361
        %396 = vmatpush.xpose.msra.mxu0 %v358
        %397 = vmatpush.xpose.msra.mxu0 %v355
        %398 = vmatpush.xpose.msra.mxu0 %v352
        %399 = vmatpush.xpose.msra.mxu0 %v349
        %400 = vmatpush.xpose.msra.mxu0 %v346
        %401 = vmatpush.xpose.msra.mxu0 %v343
        %402 = vmatpush.xpose.msra.mxu0 %v340
        %403 = vmatmul.f32.gmra.mxu0 %v337
        %v404 = vpop.f32.mrf.mxu0
        %v405 = vadd.f32 0.0, %v404
        %406 = vdwg.mxu0
        %v407 = vld [vmem:[%s1] sm:$0x1]
        %v409 = vperm.slane %v407, 0
        %v411 = vmul.f32 %v405, %v409
        %v412 = vld [vmem:[%s2] sm:$0x1]
        %v414 = vrot.slane %v411, 1
        %v416 = vmul.f32 %v405, %v414
        %v417 = vsub.f32 %v412, %v416
        %v419 = vperm.slane %v417, 0
        %v421 = vsel %vm271, %v414, %v419
        %422 = vst [vmem:[%s223] sm:$0x3] %v421
      $region44: #{self_attention_block.3} parent=35 // pred_fallthru
        _
      %p423 = scmp.lt.s32.totalorder %s19, 1
      %s424 = scalar_select %p423, %s19, 1
      %s425 = smul.addr %s424, 2
      %s426 = scalar_lea.vmem %s4, %s425
      // Predicated region
      $region45: #{self_attention_block.3} parent=35 // pred_check
        %p427 = pneg %p136
      $region46: #{self_attention_block.3} parent=35 // pred_check_branch
        %429 = sbr.rel (%p427) target = $region48
      $region47: #{self_attention_block.3} parent=35 // pred_region
        _
      $region48: #{self_attention_block.3} parent=35 // pred_fallthru
        _
    $region36: #{self_attention_block.3} parent=5 // pred_fallthru
      _
    %p430 = scmp.le.s32.totalorder 2, %s10
    // Predicated region
    $region49: #{self_attention_block.3} parent=5 // pred_check
      %p431 = pneg %p430
    $region50: #{self_attention_block.3} parent=5 // pred_check_branch
      %433 = sbr.rel (%p431) target = $region52
    $region51: #{self_attention_block.3} parent=5 // pred_region
      %s434 = ssub.s32 %s10, 2
      // Predicated region
      $region53: #{self_attention_block.3} parent=51 // pred_check
        %p435 = pneg %p142
      $region54: #{self_attention_block.3} parent=51 // pred_check_branch
        %437 = sbr.rel (%p435) target = $region56
      $region55: #{self_attention_block.3} parent=51 // pred_region
        %p438 = scmp.lt.s32.totalorder %s21, 1
        %s439 = scalar_select %p438, %s21, 1
        %s440 = smul.addr %s439, 2
        %s441 = scalar_lea.vmem %s4, %s440
      $region56: #{self_attention_block.3} parent=51 // pred_fallthru
        _
    $region52: #{self_attention_block.3} parent=5 // pred_fallthru
      _
  $region6: #{self_attention_block.3} parent=0 // loop_footer
    %s14 = sadd.s32 1, %s10
  $region7: #{self_attention_block.3} parent=0 // loop_footer_branch
    %9 = sbr.rel target = $region3
  $region8: #{self_attention_block.3} parent=0 // loop_exit
    _

// kernel: self_attention_block.5
$region0: #{self_attention_block.5}
  #allocation0 [shape = 'u32[]', space=smem, size = 0x4, offset = 0x4, fixed_abs, tag = 'smem constant byte address 0x4 - core index']
  #allocation1 [shape = 'u32[72,128]{1,0:T(1,128)}', space=vmem, size = 0x9000, scoped, tag = 'internal scratch']
  #allocation2 [shape = 'bf16[32,128]{1,0:T(8,128)(2,1)}', space=vmem, size = 0x2000, scoped, tag = 'scratch operand']
  #allocation3 [shape = 'f32[32,1]{1,0:T(8,128)}', space=vmem, size = 0x4000, scoped, tag = 'scratch operand']
  #allocation4 [shape = 'f32[32,1]{1,0:T(8,128)}', space=vmem, size = 0x4000, scoped, tag = 'scratch operand']
  #allocation5 [shape = 'f32[32,128]{1,0:T(8,128)}', space=vmem, size = 0x4000, scoped, tag = 'scratch operand']
  %s0 = inlined_call_operand.vmem [shape: f32[2,64,128], index: 0, kind: input, shape index: {}]
  %s1 = inlined_call_operand.vmem [shape: bf16[2,64,128], index: 1, kind: input, shape index: {}]
  %s2 = inlined_call_operand.vmem [shape: bf16[2,64,128], index: 2, kind: input, shape index: {}]
  %s3 = inlined_call_operand.vmem [shape: f32[2,2,128], index: 3, kind: input, shape index: {}]
  %s4 = inlined_call_operand.hbm [shape: bf16[128,128], index: 4, kind: input, shape index: {}]
  %s5 = inlined_call_operand.vmem [shape: f32[1,128], index: 5, kind: input, shape index: {}]
  %s6 = inlined_call_operand.hbm [shape: bf16[128,128], index: 6, kind: input, shape index: {}]
  %s7 = inlined_call_operand.vmem [shape: f32[1,128], index: 7, kind: input, shape index: {}]
  %s8 = inlined_call_operand.hbm [shape: f32[2,64,128], index: 8, kind: output, shape index: {}]
  %s9 = sld [smem:[#allocation0]]
  $region81: #{self_attention_block.5} parent=0
    _
  %s11 = ssub.s32 1, %s9
  %s12 = scalar_select 0, %s11, %s9
  $region1: #{self_attention_block.5} parent=0
    #allocation6 [shape = 'u8[32768]{0}', space=vmem, size = 0x8000, scoped, tag = 'input window, operand 4, single buffered']
    #allocation7 [shape = 's32[2]{0}', space=sflag, size = 0x8, scoped, tag = 'scoped memory for self_attention_block.5']
    #allocation8 [shape = 's32[2]{0}', space=sflag, size = 0x8, scoped, tag = 'scoped memory for self_attention_block.5']
    #allocation9 [shape = 'u8[32768]{0}', space=vmem, size = 0x8000, scoped, tag = 'input window, operand 6, single buffered']
    #allocation10 [shape = 's32[1]{0}', space=sflag, size = 0x4, scoped, tag = 'scoped memory for self_attention_block.5']
    #allocation11 [shape = 'u8[32768]{0}', space=vmem, size = 0x8000, scoped, tag = 'output window, operand 0']
    %13 = vsyncpa [#allocation7], 0
    %14 = vsyncpa [#allocation10], 0
    %15 = vsyncpa [#allocation8], 0
    %s16 = scalar_lea.sflag [#allocation8], 1
    %17 = vsyncpa %s16, 0
    loop: start=0, step=1, limit=10
    $region2: #{self_attention_block.5} parent=1 // loop_pre_header
      _
    $region3: #{self_attention_block.5} parent=1 // loop_header
      %s19 = sphi 0, %s23
      %p20 = scmp.ge.s32.totalorder %s19, 10
      %s26 = sphi 0, %s45
      %s27 = sphi 0, %s41
      %s28 = sphi 0, %s37
      %s29 = sphi 0, %s26
      %s30 = sphi 0, %s27
      %s31 = sphi 0, %s28
      %s32 = sphi 0, %s29
      %s33 = sphi 0, %s30
      %s34 = sphi 0, %s31
      %s50 = sphi 0, %s52
      %s53 = sphi 0, %s50
      %s54 = sphi 0, %s53
      %s70 = sphi 0, %s54
      %s76 = sphi 0, %s78
      %s79 = sphi 0, %s76
      %s80 = sphi 0, %s79
      %s96 = sphi 0, %s80
      %s102 = sphi 0, %s104
      %s105 = sphi 0, %s102
      %s106 = sphi 0, %s105
      %s122 = sphi 0, %s106
      %s128 = sphi 0, %s130
      %s131 = sphi 0, %s128
      %s132 = sphi 0, %s131
      %s148 = sphi 0, %s132
      %s152 = sphi 0, %s152
      %s154 = sphi 0, %s152
      %s155 = sphi 0, %s154
      %s169 = sphi 0, %s155
      %s173 = sphi 0, %s173
      %s175 = sphi 0, %s173
      %s176 = sphi 0, %s175
      %s190 = sphi 0, %s176
      %s194 = sphi 0, %s194
      %s196 = sphi 0, %s194
      %s197 = sphi 0, %s196
      %s211 = sphi 0, %s197
      %s215 = sphi 0, %s215
      %s217 = sphi 0, %s215
      %s218 = sphi 0, %s217
      %s232 = sphi 0, %s218
      %s240 = sphi 0, %s242
      %s243 = sphi 0, %s240
      %s244 = sphi 0, %s243
      %s260 = sphi 0, %s244
    $region4: #{self_attention_block.5} parent=1 // loop_header_branch
      %22 = sbr.rel (%p20) target = $region8
    $region5: #{self_attention_block.5} parent=1 // loop_body
      %s24 = ssub.s32 %s19, 1
      %s25 = ssub.s32 %s19, 2
      %s35 = sadd.s32 1, %s28
      %p36 = scmp.ge.s32.totalorder %s35, 2
      %s37 = scalar_select %p36, 0, %s35
      %s38 = sadd.s32 1, %s27
      %s39 = scalar_select %p36, %s38, %s27
      %p40 = scmp.ge.s32.totalorder %s39, 2
      %s41 = scalar_select %p40, 0, %s39
      %s42 = sadd.s32 1, %s26
      %s43 = scalar_select %p40, %s42, %s26
      %p44 = scmp.ge.s32.totalorder %s43, 2
      %s45 = scalar_select %p44, 0, %s43
      %s46 = ssub.s32 %s26, %s45
      %s47 = ssub.s32 %s27, %s41
      %s48 = sor.u32 %s46, %s47
      %p49 = scmp.eq.s32.totalorder %s48, 0
      %s51 = sadd.s32 %s50, 1
      %s52 = scalar_select %p49, %s50, %s51
      %p55 = pneg %p49
      %p56 = scmp.eq.s32.totalorder %s19, 7
      %p57 = por %p55, %p56
      %p58 = scmp.ne.s32.totalorder %s50, %s53
      %p59 = scmp.eq.s32.totalorder %s19, 0
      %p60 = por %p58, %p59
      %p61 = scmp.ne.s32.totalorder %s50, %s53
      %p62 = scmp.eq.s32.totalorder %s24, 7
      %p63 = por %p61, %p62
      %p64 = scmp.ne.s32.totalorder %s53, %s54
      %p65 = scmp.eq.s32.totalorder %s24, 0
      %p66 = por %p64, %p65
      %p67 = scmp.ne.s32.totalorder %s53, %s54
      %p68 = scmp.eq.s32.totalorder %s25, 7
      %p69 = por %p67, %p68
      %p71 = scmp.ne.s32.totalorder %s54, %s70
      %p72 = scmp.eq.s32.totalorder %s25, 0
      %p73 = por %p71, %p72
      %s74 = ssub.s32 %s26, %s45
      %p75 = scmp.eq.s32.totalorder %s74, 0
      %s77 = sadd.s32 %s76, 1
      %s78 = scalar_select %p75, %s76, %s77
      %p81 = pneg %p75
      %p82 = scmp.eq.s32.totalorder %s19, 7
      %p83 = por %p81, %p82
      %p84 = scmp.ne.s32.totalorder %s76, %s79
      %p85 = scmp.eq.s32.totalorder %s19, 0
      %p86 = por %p84, %p85
      %p87 = scmp.ne.s32.totalorder %s76, %s79
      %p88 = scmp.eq.s32.totalorder %s24, 7
      %p89 = por %p87, %p88
      %p90 = scmp.ne.s32.totalorder %s79, %s80
      %p91 = scmp.eq.s32.totalorder %s24, 0
      %p92 = por %p90, %p91
      %p93 = scmp.ne.s32.totalorder %s79, %s80
      %p94 = scmp.eq.s32.totalorder %s25, 7
      %p95 = por %p93, %p94
      %p97 = scmp.ne.s32.totalorder %s80, %s96
      %p98 = scmp.eq.s32.totalorder %s25, 0
      %p99 = por %p97, %p98
      %s100 = ssub.s32 %s26, %s45
      %p101 = scmp.eq.s32.totalorder %s100, 0
      %s103 = sadd.s32 %s102, 1
      %s104 = scalar_select %p101, %s102, %s103
      %p107 = pneg %p101
      %p108 = scmp.eq.s32.totalorder %s19, 7
      %p109 = por %p107, %p108
      %p110 = scmp.ne.s32.totalorder %s102, %s105
      %p111 = scmp.eq.s32.totalorder %s19, 0
      %p112 = por %p110, %p111
      %p113 = scmp.ne.s32.totalorder %s102, %s105
      %p114 = scmp.eq.s32.totalorder %s24, 7
      %p115 = por %p113, %p114
      %p116 = scmp.ne.s32.totalorder %s105, %s106
      %p117 = scmp.eq.s32.totalorder %s24, 0
      %p118 = por %p116, %p117
      %p119 = scmp.ne.s32.totalorder %s105, %s106
      %p120 = scmp.eq.s32.totalorder %s25, 7
      %p121 = por %p119, %p120
      %p123 = scmp.ne.s32.totalorder %s106, %s122
      %p124 = scmp.eq.s32.totalorder %s25, 0
      %p125 = por %p123, %p124
      %s126 = ssub.s32 %s26, %s45
      %p127 = scmp.eq.s32.totalorder %s126, 0
      %s129 = sadd.s32 %s128, 1
      %s130 = scalar_select %p127, %s128, %s129
      %p133 = pneg %p127
      %p134 = scmp.eq.s32.totalorder %s19, 7
      %p135 = por %p133, %p134
      %p136 = scmp.ne.s32.totalorder %s128, %s131
      %p137 = scmp.eq.s32.totalorder %s19, 0
      %p138 = por %p136, %p137
      %p139 = scmp.ne.s32.totalorder %s128, %s131
      %p140 = scmp.eq.s32.totalorder %s24, 7
      %p141 = por %p139, %p140
      %p142 = scmp.ne.s32.totalorder %s131, %s132
      %p143 = scmp.eq.s32.totalorder %s24, 0
      %p144 = por %p142, %p143
      %p145 = scmp.ne.s32.totalorder %s131, %s132
      %p146 = scmp.eq.s32.totalorder %s25, 7
      %p147 = por %p145, %p146
      %p149 = scmp.ne.s32.totalorder %s132, %s148
      %p150 = scmp.eq.s32.totalorder %s25, 0
      %p151 = por %p149, %p150
      %s153 = sadd.s32 %s152, 1
      %p156 = scmp.eq.s32.totalorder %s19, 7
      %p157 = scmp.ne.s32.totalorder %s152, %s154
      %p158 = scmp.eq.s32.totalorder %s19, 0
      %p159 = por %p157, %p158
      %p160 = scmp.ne.s32.totalorder %s152, %s154
      %p161 = scmp.eq.s32.totalorder %s24, 7
      %p162 = por %p160, %p161
      %p163 = scmp.ne.s32.totalorder %s154, %s155
      %p164 = scmp.eq.s32.totalorder %s24, 0
      %p165 = por %p163, %p164
      %p166 = scmp.ne.s32.totalorder %s154, %s155
      %p167 = scmp.eq.s32.totalorder %s25, 7
      %p168 = por %p166, %p167
      %p170 = scmp.ne.s32.totalorder %s155, %s169
      %p171 = scmp.eq.s32.totalorder %s25, 0
      %p172 = por %p170, %p171
      %s174 = sadd.s32 %s173, 1
      %p177 = scmp.eq.s32.totalorder %s19, 7
      %p178 = scmp.ne.s32.totalorder %s173, %s175
      %p179 = scmp.eq.s32.totalorder %s19, 0
      %p180 = por %p178, %p179
      %p181 = scmp.ne.s32.totalorder %s173, %s175
      %p182 = scmp.eq.s32.totalorder %s24, 7
      %p183 = por %p181, %p182
      %p184 = scmp.ne.s32.totalorder %s175, %s176
      %p185 = scmp.eq.s32.totalorder %s24, 0
      %p186 = por %p184, %p185
      %p187 = scmp.ne.s32.totalorder %s175, %s176
      %p188 = scmp.eq.s32.totalorder %s25, 7
      %p189 = por %p187, %p188
      %p191 = scmp.ne.s32.totalorder %s176, %s190
      %p192 = scmp.eq.s32.totalorder %s25, 0
      %p193 = por %p191, %p192
      %s195 = sadd.s32 %s194, 1
      %p198 = scmp.eq.s32.totalorder %s19, 7
      %p199 = scmp.ne.s32.totalorder %s194, %s196
      %p200 = scmp.eq.s32.totalorder %s19, 0
      %p201 = por %p199, %p200
      %p202 = scmp.ne.s32.totalorder %s194, %s196
      %p203 = scmp.eq.s32.totalorder %s24, 7
      %p204 = por %p202, %p203
      %p205 = scmp.ne.s32.totalorder %s196, %s197
      %p206 = scmp.eq.s32.totalorder %s24, 0
      %p207 = por %p205, %p206
      %p208 = scmp.ne.s32.totalorder %s196, %s197
      %p209 = scmp.eq.s32.totalorder %s25, 7
      %p210 = por %p208, %p209
      %p212 = scmp.ne.s32.totalorder %s197, %s211
      %p213 = scmp.eq.s32.totalorder %s25, 0
      %p214 = por %p212, %p213
      %s216 = sadd.s32 %s215, 1
      %p219 = scmp.eq.s32.totalorder %s19, 7
      %p220 = scmp.ne.s32.totalorder %s215, %s217
      %p221 = scmp.eq.s32.totalorder %s19, 0
      %p222 = por %p220, %p221
      %p223 = scmp.ne.s32.totalorder %s215, %s217
      %p224 = scmp.eq.s32.totalorder %s24, 7
      %p225 = por %p223, %p224
      %p226 = scmp.ne.s32.totalorder %s217, %s218
      %p227 = scmp.eq.s32.totalorder %s24, 0
      %p228 = por %p226, %p227
      %p229 = scmp.ne.s32.totalorder %s217, %s218
      %p230 = scmp.eq.s32.totalorder %s25, 7
      %p231 = por %p229, %p230
      %p233 = scmp.ne.s32.totalorder %s218, %s232
      %p234 = scmp.eq.s32.totalorder %s25, 0
      %p235 = por %p233, %p234
      %s236 = ssub.s32 %s26, %s45
      %s237 = ssub.s32 %s27, %s41
      %s238 = sor.u32 %s236, %s237
      %p239 = scmp.eq.s32.totalorder %s238, 0
      %s241 = sadd.s32 %s240, 1
      %s242 = scalar_select %p239, %s240, %s241
      %p245 = pneg %p239
      %p246 = scmp.eq.s32.totalorder %s19, 7
      %p247 = por %p245, %p246
      %p248 = scmp.ne.s32.totalorder %s240, %s243
      %p249 = scmp.eq.s32.totalorder %s19, 0
      %p250 = por %p248, %p249
      %p251 = scmp.ne.s32.totalorder %s240, %s243
      %p252 = scmp.eq.s32.totalorder %s24, 7
      %p253 = por %p251, %p252
      %p254 = scmp.ne.s32.totalorder %s243, %s244
      %p255 = scmp.eq.s32.totalorder %s24, 0
      %p256 = por %p254, %p255
      %p257 = scmp.ne.s32.totalorder %s243, %s244
      %p258 = scmp.eq.s32.totalorder %s25, 7
      %p259 = por %p257, %p258
      %p261 = scmp.ne.s32.totalorder %s244, %s260
      %p262 = scmp.eq.s32.totalorder %s25, 0
      %p263 = por %p261, %p262
      %p264 = scmp.le.s32.totalorder 1, %s19
      %p265 = scmp.lt.s32.totalorder %s19, 9
      %p266 = pnand %p264, %p265
      %p267 = pneg %p266
      // Predicated region
      $region9: #{self_attention_block.5} parent=5 // pred_check
        _
      $region10: #{self_attention_block.5} parent=5 // pred_check_branch
        %269 = sbr.rel (%p266) target = $region12
      $region11: #{self_attention_block.5} parent=5 // pred_region
        %s270 = ssub.s32 %s19, 1
        // Predicated region
        $region13: #{self_attention_block.5} parent=11 // pred_check
          %p271 = pneg %p165
        $region14: #{self_attention_block.5} parent=11 // pred_check_branch
          %273 = sbr.rel (%p271) target = $region16
        $region15: #{self_attention_block.5} parent=11 // pred_region
          %275 = vsyncadd [#allocation7], 0
          %s276 = sshll.u32 %s4, 4
          %s277 = int_to_ptr.hbm [resolvable:$true] %s276
          %s278 = sshll.u32 [#allocation6], 4
          %s279 = int_to_ptr.vmem [resolvable:$true] %s278
          %284 = dma.hbm_to_vmem [thread:$0]  %s277, 1024, %s279, [#allocation7], 64, 64, 4
        $region16: #{self_attention_block.5} parent=11 // pred_fallthru
          _
        // Predicated region
        $region17: #{self_attention_block.5} parent=11 // pred_check
          %p285 = pneg %p186
        $region18: #{self_attention_block.5} parent=11 // pred_check_branch
          %287 = sbr.rel (%p285) target = $region20
        $region19: #{self_attention_block.5} parent=11 // pred_region
          _
        $region20: #{self_attention_block.5} parent=11 // pred_fallthru
          _
        // Predicated region
        $region21: #{self_attention_block.5} parent=11 // pred_check
          %p288 = pneg %p207
        $region22: #{self_attention_block.5} parent=11 // pred_check_branch
          %290 = sbr.rel (%p288) target = $region24
        $region23: #{self_attention_block.5} parent=11 // pred_region
          %292 = vsyncadd [#allocation10], 0
          %s293 = sshll.u32 %s6, 4
          %s294 = int_to_ptr.hbm [resolvable:$true] %s293
          %s295 = sshll.u32 [#allocation9], 4
          %s296 = int_to_ptr.vmem [resolvable:$true] %s295
          %301 = dma.hbm_to_vmem [thread:$0]  %s294, 1024, %s296, [#allocation10], 64, 64, 4
        $region24: #{self_attention_block.5} parent=11 // pred_fallthru
          _
        // Predicated region
        $region25: #{self_attention_block.5} parent=11 // pred_check
          %p302 = pneg %p228
        $region26: #{self_attention_block.5} parent=11 // pred_check_branch
          %304 = sbr.rel (%p302) target = $region28
        $region27: #{self_attention_block.5} parent=11 // pred_region
          _
        $region28: #{self_attention_block.5} parent=11 // pred_fallthru
          _
      $region12: #{self_attention_block.5} parent=5 // pred_fallthru
        _
      %p305 = scmp.lt.s32.totalorder %s19, 8
      // Predicated region
      $region29: #{self_attention_block.5} parent=5 // pred_check
        %p306 = pneg %p305
      $region30: #{self_attention_block.5} parent=5 // pred_check_branch
        %308 = sbr.rel (%p306) target = $region32
      $region31: #{self_attention_block.5} parent=5 // pred_region
        // Predicated region
        $region33: #{self_attention_block.5} parent=31 // pred_check
          %p309 = pneg %p60
        $region34: #{self_attention_block.5} parent=31 // pred_check_branch
          %311 = sbr.rel (%p309) target = $region36
        $region35: #{self_attention_block.5} parent=31 // pred_region
          %s312 = smul.u32 4, %s27
          %p313 = scmp.lt.s32.totalorder %s26, 1
          %s314 = scalar_select %p313, %s26, 1
          %p315 = scmp.lt.s32.totalorder %s312, 7
          %s316 = scalar_select %p315, %s312, 7
          %s317 = smul.addr %s314, 8
          %s318 = sadd.s32 %s316, %s317
          %s319 = smul.addr %s318, 8
          %s320 = scalar_lea.vmem %s0, %s319
          %s321 = smul.u32 4, %s27
        $region36: #{self_attention_block.5} parent=31 // pred_fallthru
          _
        // Predicated region
        $region37: #{self_attention_block.5} parent=31 // pred_check
          %p322 = pneg %p86
        $region38: #{self_attention_block.5} parent=31 // pred_check_branch
          %324 = sbr.rel (%p322) target = $region40
        $region39: #{self_attention_block.5} parent=31 // pred_region
          %p325 = scmp.lt.s32.totalorder %s26, 1
          %s326 = scalar_select %p325, %s26, 1
          %s327 = smul.addr %s326, 8
          %s328 = smul.addr %s327, 4
          %s329 = scalar_lea.vmem %s1, %s328
        $region40: #{self_attention_block.5} parent=31 // pred_fallthru
          _
        // Predicated region
        $region41: #{self_attention_block.5} parent=31 // pred_check
          %p330 = pneg %p112
        $region42: #{self_attention_block.5} parent=31 // pred_check_branch
          %332 = sbr.rel (%p330) target = $region44
        $region43: #{self_attention_block.5} parent=31 // pred_region
          %p333 = scmp.lt.s32.totalorder %s26, 1
          %s334 = scalar_select %p333, %s26, 1
          %s335 = smul.addr %s334, 8
          %s336 = smul.addr %s335, 4
          %s337 = scalar_lea.vmem %s2, %s336
        $region44: #{self_attention_block.5} parent=31 // pred_fallthru
          _
        // Predicated region
        $region45: #{self_attention_block.5} parent=31 // pred_check
          %p338 = pneg %p138
        $region46: #{self_attention_block.5} parent=31 // pred_check_branch
          %340 = sbr.rel (%p338) target = $region48
        $region47: #{self_attention_block.5} parent=31 // pred_region
          %p341 = scmp.lt.s32.totalorder %s26, 1
          %s342 = scalar_select %p341, %s26, 1
          %s343 = smul.addr %s342, 2
          %s344 = scalar_lea.vmem %s3, %s343
        $region48: #{self_attention_block.5} parent=31 // pred_fallthru
          _
      $region32: #{self_attention_block.5} parent=5 // pred_fallthru
        _
      %p345 = scmp.le.s32.totalorder 1, %s19
      %p346 = scmp.lt.s32.totalorder %s19, 9
      %p347 = pnand %p345, %p346
      %p348 = pneg %p347
      // Predicated region
      $region49: #{self_attention_block.5} parent=5 // pred_check
        _
      $region50: #{self_attention_block.5} parent=5 // pred_check_branch
        %350 = sbr.rel (%p347) target = $region52
      $region51: #{self_attention_block.5} parent=5 // pred_region
        %s351 = ssub.s32 %s19, 1
        // Predicated region
        $region53: #{self_attention_block.5} parent=51 // pred_check
          %p352 = pneg %p165
        $region54: #{self_attention_block.5} parent=51 // pred_check_branch
          %354 = sbr.rel (%p352) target = $region56
        $region55: #{self_attention_block.5} parent=51 // pred_region
          %356 = dma.done [#allocation7], 1024
        $region56: #{self_attention_block.5} parent=51 // pred_fallthru
          _
        // Predicated region
        $region57: #{self_attention_block.5} parent=51 // pred_check
          %p357 = pneg %p207
        $region58: #{self_attention_block.5} parent=51 // pred_check_branch
          %359 = sbr.rel (%p357) target = $region60
        $region59: #{self_attention_block.5} parent=51 // pred_region
          %361 = dma.done [#allocation10], 1024
        $region60: #{self_attention_block.5} parent=51 // pred_fallthru
          _
        %s362 = smul.u32 4, %s30
        %p363 = scmp.lt.s32.totalorder %s29, 1
        %s364 = scalar_select %p363, %s29, 1
        %p365 = scmp.lt.s32.totalorder %s362, 7
        %s366 = scalar_select %p365, %s362, 7
        %s367 = smul.addr %s364, 8
        %s368 = sadd.s32 %s366, %s367
        %s369 = smul.addr %s368, 8
        %s370 = scalar_lea.vmem %s0, %s369
        %p371 = pneg %p66
        %p372 = pneg %p63
        %p373 = scmp.lt.s32.totalorder %s29, 1
        %s374 = scalar_select %p373, %s29, 1
        %s375 = smul.addr %s374, 8
        %s376 = smul.addr %s375, 4
        %s377 = scalar_lea.vmem %s1, %s376
        %p378 = pneg %p92
        %p379 = pneg %p89
        %p380 = scmp.lt.s32.totalorder %s29, 1
        %s381 = scalar_select %p380, %s29, 1
        %s382 = smul.addr %s381, 8
        %s383 = smul.addr %s382, 4
        %s384 = scalar_lea.vmem %s2, %s383
        %p385 = pneg %p118
        %p386 = pneg %p115
        %p387 = scmp.lt.s32.totalorder %s29, 1
        %s388 = scalar_select %p387, %s29, 1
        %s389 = smul.addr %s388, 2
        %s390 = scalar_lea.vmem %s3, %s389
        %p391 = pneg %p144
        %p392 = pneg %p141
        %p393 = pneg %p165
        %p394 = pneg %p162
        %p395 = pneg %p186
        %p396 = pneg %p183
        %p397 = pneg %p207
        %p398 = pneg %p204
        %p399 = pneg %p228
        %p400 = pneg %p225
        %p401 = pneg %p256
        %p402 = pneg %p253
        %s403 = sand.u32 %s243, 1
        %s404 = scalar_lea.sflag [#allocation8], %s403
        %s405 = sand.u32 %s243, 1
        %s406 = smul.addr %s405, 32
        %s407 = scalar_lea.vmem [#allocation11], %s406
        %s408 = smul.u32 4, %s30
        %p409 = scmp.lt.s32.totalorder %s29, 1
        %s410 = scalar_select %p409, %s29, 1
        %p411 = scmp.lt.s32.totalorder %s408, 7
        %s412 = scalar_select %p411, %s408, 7
        %s413 = smul.addr %s410, 8
        %s414 = sadd.s32 %s412, %s413
        %s415 = smul.addr %s414, 8
        %s416 = scalar_lea.vmem %s0, %s415
        %s417 = smul.u32 4, %s30
        %p418 = scmp.lt.s32.totalorder %s29, 1
        %s419 = scalar_select %p418, %s29, 1
        %s420 = smul.addr %s419, 8
        %s421 = smul.addr %s420, 4
        %s422 = scalar_lea.vmem %s1, %s421
        %p423 = scmp.lt.s32.totalorder %s29, 1
        %s424 = scalar_select %p423, %s29, 1
        %s425 = smul.addr %s424, 8
        %s426 = smul.addr %s425, 4
        %s427 = scalar_lea.vmem %s2, %s426
        %p428 = scmp.lt.s32.totalorder %s29, 1
        %s429 = scalar_select %p428, %s29, 1
        %s430 = smul.addr %s429, 2
        %s431 = scalar_lea.vmem %s3, %s430
        %s432 = smul.u32 4, %s30
        %v434 = vld [vmem:[%s431] sm:$0x3]
        %p435 = scmp.eq.s32.totalorder %s31, 0
        // Predicated region
        $region61: #{self_attention_block.5} parent=51 // pred_check
          %p436 = pneg %p435
        $region62: #{self_attention_block.5} parent=51 // pred_check_branch
          %438 = sbr.rel (%p436) target = $region64
        $region63: #{self_attention_block.5} parent=51 // pred_region
          %v439 = vld [vmem:[%s416] sm:$0xff]
          %v440 = vld [vmem:[%s416 + $0x8] sm:$0xff]
          %v441 = vld [vmem:[%s416 + $0x10] sm:$0xff]
          %v442 = vld [vmem:[%s416 + $0x18] sm:$0xff]
          %v443 = vperm.slane %v434, 0
          %v444 = vmul.f32 %v439, %v443
          %v445 = vmul.f32 %v440, %v443
          %v446 = vmul.f32 %v441, %v443
          %v447 = vmul.f32 %v442, %v443
          %v448 = vperm.slane %v434, 1
          %v449 = vadd.f32 %v444, %v448
          %v450 = vadd.f32 %v445, %v448
          %v451 = vadd.f32 %v446, %v448
          %v452 = vadd.f32 %v447, %v448
          %v453 = vpack.c.bf16 %v450, %v449
          %v454 = vpack.c.bf16 %v452, %v451
          %v455 = vld [vmem:[#allocation6] sm:$0xf]
          %v456 = vld [vmem:[#allocation6 + $0x4] sm:$0xf]
          %v457 = vld [vmem:[#allocation6 + $0x8] sm:$0xf]
          %v458 = vld [vmem:[#allocation6 + $0xc] sm:$0xf]
          %v459 = vld [vmem:[#allocation6 + $0x10] sm:$0xf]
          %v460 = vld [vmem:[#allocation6 + $0x14] sm:$0xf]
          %v461 = vld [vmem:[#allocation6 + $0x18] sm:$0xf]
          %v462 = vld [vmem:[#allocation6 + $0x1c] sm:$0xf]
          %v463 = vld [vmem:[#allocation6 + $0x20] sm:$0xf]
          %v464 = vld [vmem:[#allocation6 + $0x24] sm:$0xf]
          %v465 = vld [vmem:[#allocation6 + $0x28] sm:$0xf]
          %v466 = vld [vmem:[#allocation6 + $0x2c] sm:$0xf]
          %v467 = vld [vmem:[#allocation6 + $0x30] sm:$0xf]
          %v468 = vld [vmem:[#allocation6 + $0x34] sm:$0xf]
          %v469 = vld [vmem:[#allocation6 + $0x38] sm:$0xf]
          %v470 = vld [vmem:[#allocation6 + $0x3c] sm:$0xf]
          %v471 = vld [vmem:[%s5] sm:$0x1]
          %v473 = vperm.slane %v471, 0
          %v491 = vunpack.c.l.b16 %v455
          %v492 = vunpack.c.l.b16 %v456
          %v493 = vunpack.c.l.b16 %v457
          %v494 = vunpack.c.l.b16 %v458
          %v495 = vunpack.c.l.b16 %v459
          %v496 = vunpack.c.l.b16 %v460
          %v497 = vunpack.c.l.b16 %v461
          %v498 = vunpack.c.l.b16 %v462
          %v499 = vunpack.c.l.b16 %v463
          %v500 = vunpack.c.l.b16 %v464
          %v501 = vunpack.c.l.b16 %v465
          %v502 = vunpack.c.l.b16 %v466
          %v503 = vunpack.c.l.b16 %v467
          %v504 = vunpack.c.l.b16 %v468
          %v505 = vunpack.c.l.b16 %v469
          %v506 = vunpack.c.l.b16 %v470
          %v507 = vpack.c.b16 %v492, %v491
          %v508 = vpack.c.b16 %v494, %v493
          %v509 = vpack.c.b16 %v496, %v495
          %v510 = vpack.c.b16 %v498, %v497
          %v511 = vpack.c.b16 %v500, %v499
          %v512 = vpack.c.b16 %v502, %v501
          %v513 = vpack.c.b16 %v504, %v503
          %v514 = vpack.c.b16 %v506, %v505
          %523 = vmatpush.bf16.msra.mxu0 %v514
          %524 = vmatpush.bf16.msra.mxu0 %v513
          %525 = vmatpush.bf16.msra.mxu0 %v512
          %526 = vmatpush.bf16.msra.mxu0 %v511
          %527 = vmatpush.bf16.msra.mxu0 %v510
          %528 = vmatpush.bf16.msra.mxu0 %v509
          %529 = vmatpush.bf16.msra.mxu0 %v508
          %530 = vmatpush.bf16.msra.mxu0 %v507
          %531 = vmatmul.bf16.gmra.mxu0 %v453
          %v532 = vpop.f32.mrf.mxu0
          %v533 = vadd.f32 %v473, %v532
          %v534 = vpop.f32.mrf.mxu0
          %v535 = vadd.f32 %v473, %v534
          %536 = vmatmul.bf16.gmra.mxu0 %v454
          %v537 = vpop.f32.mrf.mxu0
          %v538 = vadd.f32 %v473, %v537
          %v539 = vpop.f32.mrf.mxu0
          %v540 = vadd.f32 %v473, %v539
          %541 = vdwg.mxu0
          %v542 = vmul.f32 %v533, 0.088388346
          %v543 = vmul.f32 %v535, 0.088388346
          %v544 = vmul.f32 %v538, 0.088388346
          %v545 = vmul.f32 %v540, 0.088388346
          %v546 = vpack.c.bf16 %v542, %v542
          %v547 = vpack.c.bf16 %v543, %v543
          %v548 = vpack.c.bf16 %v544, %v544
          %v549 = vpack.c.bf16 %v545, %v545
          %550 = vst [vmem:[#allocation2] sm:$0xf] %v546
          %551 = vst [vmem:[#allocation2 + $0x4] sm:$0xf] %v547
          %552 = vst [vmem:[#allocation2 + $0x8] sm:$0xf] %v548
          %553 = vst [vmem:[#allocation2 + $0xc] sm:$0xf] %v549
          %vm554 = vcmask 7168
          %555 = vst.msk [vmem:[#allocation3] sm:$0xff] %vm554, -inf
          %556 = vst.msk [vmem:[#allocation3 + $0x8] sm:$0xff] %vm554, -inf
          %557 = vst.msk [vmem:[#allocation3 + $0x10] sm:$0xff] %vm554, -inf
          %558 = vst.msk [vmem:[#allocation3 + $0x18] sm:$0xff] %vm554, -inf
          %559 = vst.msk [vmem:[#allocation4] sm:$0xff] %vm554, 0.0
          %560 = vst.msk [vmem:[#allocation4 + $0x8] sm:$0xff] %vm554, 0.0
          %561 = vst.msk [vmem:[#allocation4 + $0x10] sm:$0xff] %vm554, 0.0
          %562 = vst.msk [vmem:[#allocation4 + $0x18] sm:$0xff] %vm554, 0.0
          %563 = vst [vmem:[#allocation5] sm:$0xff] 0.0
          %564 = vst [vmem:[#allocation5 + $0x8] sm:$0xff] 0.0
          %565 = vst [vmem:[#allocation5 + $0x10] sm:$0xff] 0.0
          %566 = vst [vmem:[#allocation5 + $0x18] sm:$0xff] 0.0
        $region64: #{self_attention_block.5} parent=51 // pred_fallthru
          _
        %s567 = smul.u32 %s31, 32
        %s568 = sshra.s32 %s567, 3
        %s569 = sand.u32 %s567, 7
        %s570 = smul.addr %s568, 4
        %s571 = scalar_lea.vmem %s422, %s570
        %v572 = vld [vmem:[%s571] sm:$0xf]
        %v573 = vld [vmem:[%s571 + $0x4] sm:$0xf]
        %v574 = vld [vmem:[%s571 + $0x8] sm:$0xf]
        %v575 = vld [vmem:[%s571 + $0xc] sm:$0xf]
        %s576 = smul.addr %s568, 4
        %s577 = scalar_lea.vmem %s427, %s576
        %v578 = vld [vmem:[%s577] sm:$0xf]
        %v579 = vld [vmem:[%s577 + $0x4] sm:$0xf]
        %v580 = vld [vmem:[%s577 + $0x8] sm:$0xf]
        %v581 = vld [vmem:[%s577 + $0xc] sm:$0xf]
        %v582 = vld [vmem:[#allocation2] sm:$0xf]
        %v583 = vld [vmem:[#allocation2 + $0x4] sm:$0xf]
        %v584 = vld [vmem:[#allocation2 + $0x8] sm:$0xf]
        %v585 = vld [vmem:[#allocation2 + $0xc] sm:$0xf]
        %v590 = vunpack.c.l.b16 %v582
        %v591 = vunpack.c.l.b16 %v583
        %v592 = vunpack.c.l.b16 %v584
        %v593 = vunpack.c.l.b16 %v585
        %v594 = vpack.c.b16 %v591, %v590
        %v595 = vpack.c.b16 %v593, %v592
        %v602 = vunpack.c.l.b16 %v572
        %v603 = vunpack.c.l.b16 %v573
        %v604 = vunpack.c.l.b16 %v574
        %v605 = vunpack.c.l.b16 %v575
        %v606 = vpack.c.b16 %v603, %v602
        %v607 = vpack.c.b16 %v605, %v604
        %610 = vmatpush.bf16.xpose.msra.mxu0 0
        %611 = vmatpush.bf16.xpose.msra.mxu0 0
        %612 = vmatpush.bf16.xpose.msra.mxu0 0
        %613 = vmatpush.bf16.xpose.msra.mxu0 0
        %614 = vmatpush.bf16.xpose.msra.mxu0 0
        %615 = vmatpush.bf16.xpose.msra.mxu0 0
        %616 = vmatpush.bf16.xpose.msra.mxu0 %v607
        %617 = vmatpush.bf16.xpose.msra.mxu0 %v606
        %618 = vmatmul.bf16.gmra.mxu0 %v594
        %v619 = vpop.f32.mrf.mxu0
        %v620 = vadd.f32 0.0, %v619
        %v621 = vpop.f32.mrf.mxu0
        %v622 = vadd.f32 0.0, %v621
        %623 = vmatmul.bf16.gmra.mxu0 %v595
        %v624 = vpop.f32.mrf.mxu0
        %v625 = vadd.f32 0.0, %v624
        %v626 = vpop.f32.mrf.mxu0
        %v627 = vadd.f32 0.0, %v626
        %628 = vdwg.mxu0
        %v629 = vld [vmem:[#allocation3] sm:$0xff]
        %v630 = vld [vmem:[#allocation3 + $0x8] sm:$0xff]
        %v631 = vld [vmem:[#allocation3 + $0x10] sm:$0xff]
        %v632 = vld [vmem:[#allocation3 + $0x18] sm:$0xff]
        %vm633 = vcmask 261120
        %v634 = vsel %vm633, %v620, -inf
        %635 = vmax.xlane.f32.xlu0 %v634
        %v636 = vpop.xlane.xlu0 %635
        %v637 = vsel %vm633, %v622, -inf
        %638 = vmax.xlane.f32.xlu0 %v637
        %v639 = vpop.xlane.xlu0 %638
        %v640 = vsel %vm633, %v625, -inf
        %641 = vmax.xlane.f32.xlu0 %v640
        %v642 = vpop.xlane.xlu0 %641
        %v643 = vsel %vm633, %v627, -inf
        %644 = vmax.xlane.f32.xlu0 %v643
        %v645 = vpop.xlane.xlu0 %644
        %v646 = vmax.f32 %v629, %v636
        %v647 = vmax.f32 %v630, %v639
        %v648 = vmax.f32 %v631, %v642
        %v649 = vmax.f32 %v632, %v645
        %v650 = vsub.f32 %v629, %v646
        %v651 = vsub.f32 %v630, %v647
        %v652 = vsub.f32 %v631, %v648
        %v653 = vsub.f32 %v632, %v649
        %v654 = vmul.f32 %v650, 1.442695
        %v655 = vpow.pop %v654
        %v656 = vmul.f32 %v651, 1.442695
        %v657 = vpow.pop %v656
        %v658 = vmul.f32 %v652, 1.442695
        %v659 = vpow.pop %v658
        %v660 = vmul.f32 %v653, 1.442695
        %v661 = vpow.pop %v660
        %663 = vset.pattern.permute.xlu0 0
        %664 = vperm.xlu0 %663, %v646
        %v665 = vpop.permute.xlu0 %664
        %668 = vset.pattern.permute.xlu0 0
        %669 = vperm.xlu0 %668, %v647
        %v670 = vpop.permute.xlu0 %669
        %673 = vset.pattern.permute.xlu0 0
        %674 = vperm.xlu0 %673, %v648
        %v675 = vpop.permute.xlu0 %674
        %678 = vset.pattern.permute.xlu0 0
        %679 = vperm.xlu0 %678, %v649
        %v680 = vpop.permute.xlu0 %679
        %v682 = vsub.f32 %v620, %v665
        %v683 = vsub.f32 %v622, %v670
        %v684 = vsub.f32 %v625, %v675
        %v685 = vsub.f32 %v627, %v680
        %v686 = vmul.f32 %v682, 1.442695
        %v687 = vpow.pop %v686
        %v688 = vmul.f32 %v683, 1.442695
        %v689 = vpow.pop %v688
        %v690 = vmul.f32 %v684, 1.442695
        %v691 = vpow.pop %v690
        %v692 = vmul.f32 %v685, 1.442695
        %v693 = vpow.pop %v692
        %v694 = vld [vmem:[#allocation4] sm:$0xff]
        %v695 = vld [vmem:[#allocation4 + $0x8] sm:$0xff]
        %v696 = vld [vmem:[#allocation4 + $0x10] sm:$0xff]
        %v697 = vld [vmem:[#allocation4 + $0x18] sm:$0xff]
        %v698 = vmul.f32 %v655, %v694
        %v699 = vmul.f32 %v657, %v695
        %v700 = vmul.f32 %v659, %v696
        %v701 = vmul.f32 %v661, %v697
        %v702 = vsel %vm633, %v687, 0.0
        %703 = vadd.xlane.f32.xlu0 %v702
        %v704 = vpop.xlane.xlu0 %703
        %v705 = vsel %vm633, %v689, 0.0
        %706 = vadd.xlane.f32.xlu0 %v705
        %v707 = vpop.xlane.xlu0 %706
        %v708 = vsel %vm633, %v691, 0.0
        %709 = vadd.xlane.f32.xlu0 %v708
        %v710 = vpop.xlane.xlu0 %709
        %v711 = vsel %vm633, %v693, 0.0
        %712 = vadd.xlane.f32.xlu0 %v711
        %v713 = vpop.xlane.xlu0 %712
        %v714 = vadd.f32 %v698, %v704
        %v715 = vadd.f32 %v699, %v707
        %v716 = vadd.f32 %v700, %v710
        %v717 = vadd.f32 %v701, %v713
        %vm718 = vcmask 7168
        %719 = vst.msk [vmem:[#allocation4] sm:$0xff] %vm718, %v714
        %720 = vst.msk [vmem:[#allocation4 + $0x8] sm:$0xff] %vm718, %v715
        %721 = vst.msk [vmem:[#allocation4 + $0x10] sm:$0xff] %vm718, %v716
        %722 = vst.msk [vmem:[#allocation4 + $0x18] sm:$0xff] %vm718, %v717
        %v723 = vld [vmem:[#allocation5] sm:$0xff]
        %v724 = vld [vmem:[#allocation5 + $0x8] sm:$0xff]
        %v725 = vld [vmem:[#allocation5 + $0x10] sm:$0xff]
        %v726 = vld [vmem:[#allocation5 + $0x18] sm:$0xff]
        %728 = vset.pattern.permute.xlu0 0
        %729 = vperm.xlu0 %728, %v655
        %v730 = vpop.permute.xlu0 %729
        %733 = vset.pattern.permute.xlu0 0
        %734 = vperm.xlu0 %733, %v657
        %v735 = vpop.permute.xlu0 %734
        %738 = vset.pattern.permute.xlu0 0
        %739 = vperm.xlu0 %738, %v659
        %v740 = vpop.permute.xlu0 %739
        %743 = vset.pattern.permute.xlu0 0
        %744 = vperm.xlu0 %743, %v661
        %v745 = vpop.permute.xlu0 %744
        %v747 = vmul.f32 %v730, %v723
        %v748 = vmul.f32 %v735, %v724
        %v749 = vmul.f32 %v740, %v725
        %v750 = vmul.f32 %v745, %v726
        %v751 = vpack.c.bf16 %v689, %v687
        %v752 = vpack.c.bf16 %v693, %v691
        %v757 = vunpack.c.l.b16 %v578
        %v758 = vunpack.c.l.b16 %v579
        %v759 = vunpack.c.l.b16 %v580
        %v760 = vunpack.c.l.b16 %v581
        %v761 = vpack.c.b16 %v758, %v757
        %v762 = vpack.c.b16 %v760, %v759
        %v766 = vsel %vm633, %v751, 0
        %v769 = vsel %vm633, %v752, 0
        %771 = vmatpush.bf16.msra.mxu0 0
        %772 = vmatpush.bf16.msra.mxu0 0
        %773 = vmatpush.bf16.msra.mxu0 0
        %774 = vmatpush.bf16.msra.mxu0 0
        %775 = vmatpush.bf16.msra.mxu0 0
        %776 = vmatpush.bf16.msra.mxu0 0
        %777 = vmatpush.bf16.msra.mxu0 %v762
        %778 = vmatpush.bf16.msra.mxu0 %v761
        %779 = vmatmul.bf16.gmra.mxu0 %v766
        %v780 = vpop.f32.mrf.mxu0
        %v781 = vadd.f32 0.0, %v780
        %v782 = vpop.f32.mrf.mxu0
        %v783 = vadd.f32 0.0, %v782
        %784 = vmatmul.bf16.gmra.mxu0 %v769
        %v785 = vpop.f32.mrf.mxu0
        %v786 = vadd.f32 0.0, %v785
        %v787 = vpop.f32.mrf.mxu0
        %v788 = vadd.f32 0.0, %v787
        %789 = vdwg.mxu0
        %v790 = vadd.f32 %v747, %v781
        %v791 = vadd.f32 %v748, %v783
        %v792 = vadd.f32 %v749, %v786
        %v793 = vadd.f32 %v750, %v788
        %794 = vst [vmem:[#allocation5] sm:$0xff] %v790
        %795 = vst [vmem:[#allocation5 + $0x8] sm:$0xff] %v791
        %796 = vst [vmem:[#allocation5 + $0x10] sm:$0xff] %v792
        %797 = vst [vmem:[#allocation5 + $0x18] sm:$0xff] %v793
        %798 = vst.msk [vmem:[#allocation3] sm:$0xff] %vm718, %v646
        %799 = vst.msk [vmem:[#allocation3 + $0x8] sm:$0xff] %vm718, %v647
        %800 = vst.msk [vmem:[#allocation3 + $0x10] sm:$0xff] %vm718, %v648
        %801 = vst.msk [vmem:[#allocation3 + $0x18] sm:$0xff] %vm718, %v649
        %p802 = scmp.eq.s32.totalorder %s31, 1
        // Predicated region
        $region65: #{self_attention_block.5} parent=51 // pred_check
          %p803 = pneg %p802
        $region66: #{self_attention_block.5} parent=51 // pred_check_branch
          %805 = sbr.rel (%p803) target = $region68
        $region67: #{self_attention_block.5} parent=51 // pred_region
          %v806 = vld [vmem:[#allocation4] sm:$0xff]
          %v807 = vld [vmem:[#allocation4 + $0x8] sm:$0xff]
          %v808 = vld [vmem:[#allocation4 + $0x10] sm:$0xff]
          %v809 = vld [vmem:[#allocation4 + $0x18] sm:$0xff]
          %v810 = vrcp.pop %v806
          %v811 = vrcp.pop %v807
          %v812 = vrcp.pop %v808
          %v813 = vrcp.pop %v809
          %v814 = vld [vmem:[#allocation5] sm:$0xff]
          %v815 = vld [vmem:[#allocation5 + $0x8] sm:$0xff]
          %v816 = vld [vmem:[#allocation5 + $0x10] sm:$0xff]
          %v817 = vld [vmem:[#allocation5 + $0x18] sm:$0xff]
          %819 = vset.pattern.permute.xlu0 0
          %820 = vperm.xlu0 %819, %v810
          %v821 = vpop.permute.xlu0 %820
          %824 = vset.pattern.permute.xlu0 0
          %825 = vperm.xlu0 %824, %v811
          %v826 = vpop.permute.xlu0 %825
          %829 = vset.pattern.permute.xlu0 0
          %830 = vperm.xlu0 %829, %v812
          %v831 = vpop.permute.xlu0 %830
          %834 = vset.pattern.permute.xlu0 0
          %835 = vperm.xlu0 %834, %v813
          %v836 = vpop.permute.xlu0 %835
          %v838 = vmul.f32 %v814, %v821
          %v839 = vmul.f32 %v815, %v826
          %v840 = vmul.f32 %v816, %v831
          %v841 = vmul.f32 %v817, %v836
          %v842 = vpack.c.bf16 %v839, %v838
          %v843 = vpack.c.bf16 %v841, %v840
          %v844 = vld [vmem:[#allocation9] sm:$0xf]
          %v845 = vld [vmem:[#allocation9 + $0x4] sm:$0xf]
          %v846 = vld [vmem:[#allocation9 + $0x8] sm:$0xf]
          %v847 = vld [vmem:[#allocation9 + $0xc] sm:$0xf]
          %v848 = vld [vmem:[#allocation9 + $0x10] sm:$0xf]
          %v849 = vld [vmem:[#allocation9 + $0x14] sm:$0xf]
          %v850 = vld [vmem:[#allocation9 + $0x18] sm:$0xf]
          %v851 = vld [vmem:[#allocation9 + $0x1c] sm:$0xf]
          %v852 = vld [vmem:[#allocation9 + $0x20] sm:$0xf]
          %v853 = vld [vmem:[#allocation9 + $0x24] sm:$0xf]
          %v854 = vld [vmem:[#allocation9 + $0x28] sm:$0xf]
          %v855 = vld [vmem:[#allocation9 + $0x2c] sm:$0xf]
          %v856 = vld [vmem:[#allocation9 + $0x30] sm:$0xf]
          %v857 = vld [vmem:[#allocation9 + $0x34] sm:$0xf]
          %v858 = vld [vmem:[#allocation9 + $0x38] sm:$0xf]
          %v859 = vld [vmem:[#allocation9 + $0x3c] sm:$0xf]
          %v860 = vld [vmem:[%s7] sm:$0x1]
          %v862 = vperm.slane %v860, 0
          %v880 = vunpack.c.l.b16 %v844
          %v881 = vunpack.c.l.b16 %v845
          %v882 = vunpack.c.l.b16 %v846
          %v883 = vunpack.c.l.b16 %v847
          %v884 = vunpack.c.l.b16 %v848
          %v885 = vunpack.c.l.b16 %v849
          %v886 = vunpack.c.l.b16 %v850
          %v887 = vunpack.c.l.b16 %v851
          %v888 = vunpack.c.l.b16 %v852
          %v889 = vunpack.c.l.b16 %v853
          %v890 = vunpack.c.l.b16 %v854
          %v891 = vunpack.c.l.b16 %v855
          %v892 = vunpack.c.l.b16 %v856
          %v893 = vunpack.c.l.b16 %v857
          %v894 = vunpack.c.l.b16 %v858
          %v895 = vunpack.c.l.b16 %v859
          %v896 = vpack.c.b16 %v881, %v880
          %v897 = vpack.c.b16 %v883, %v882
          %v898 = vpack.c.b16 %v885, %v884
          %v899 = vpack.c.b16 %v887, %v886
          %v900 = vpack.c.b16 %v889, %v888
          %v901 = vpack.c.b16 %v891, %v890
          %v902 = vpack.c.b16 %v893, %v892
          %v903 = vpack.c.b16 %v895, %v894
          %912 = vmatpush.bf16.msra.mxu0 %v903
          %913 = vmatpush.bf16.msra.mxu0 %v902
          %914 = vmatpush.bf16.msra.mxu0 %v901
          %915 = vmatpush.bf16.msra.mxu0 %v900
          %916 = vmatpush.bf16.msra.mxu0 %v899
          %917 = vmatpush.bf16.msra.mxu0 %v898
          %918 = vmatpush.bf16.msra.mxu0 %v897
          %919 = vmatpush.bf16.msra.mxu0 %v896
          %920 = vmatmul.bf16.gmra.mxu0 %v842
          %v921 = vpop.f32.mrf.mxu0
          %v922 = vadd.f32 %v862, %v921
          %v923 = vpop.f32.mrf.mxu0
          %v924 = vadd.f32 %v862, %v923
          %925 = vmatmul.bf16.gmra.mxu0 %v843
          %v926 = vpop.f32.mrf.mxu0
          %v927 = vadd.f32 %v862, %v926
          %v928 = vpop.f32.mrf.mxu0
          %v929 = vadd.f32 %v862, %v928
          %930 = vdwg.mxu0
          %v931 = vld [vmem:[%s416] sm:$0xff]
          %v932 = vld [vmem:[%s416 + $0x8] sm:$0xff]
          %v933 = vld [vmem:[%s416 + $0x10] sm:$0xff]
          %v934 = vld [vmem:[%s416 + $0x18] sm:$0xff]
          %v935 = vadd.f32 %v922, %v931
          %v936 = vadd.f32 %v924, %v932
          %v937 = vadd.f32 %v927, %v933
          %v938 = vadd.f32 %v929, %v934
          %939 = vst [vmem:[%s407] sm:$0xff] %v935
          %940 = vst [vmem:[%s407 + $0x8] sm:$0xff] %v936
          %941 = vst [vmem:[%s407 + $0x10] sm:$0xff] %v937
          %942 = vst [vmem:[%s407 + $0x18] sm:$0xff] %v938
        $region68: #{self_attention_block.5} parent=51 // pred_fallthru
          _
        %s943 = sand.u32 %s243, 1
        %s944 = scalar_lea.sflag [#allocation8], %s943
        %s945 = sand.u32 %s243, 1
        %s946 = smul.addr %s945, 32
        %s947 = scalar_lea.vmem [#allocation11], %s946
        // Predicated region
        $region69: #{self_attention_block.5} parent=51 // pred_check
          %p948 = pneg %p253
        $region70: #{self_attention_block.5} parent=51 // pred_check_branch
          %950 = sbr.rel (%p948) target = $region72
        $region71: #{self_attention_block.5} parent=51 // pred_region
          %s951 = smul.u32 4, %s30
          %953 = vsyncadd %s944, 0
          %s954 = smul.addr %s29, 8
          %s955 = sadd.s32 %s951, %s954
          %s956 = smul.addr %s955, 8
          %s957 = scalar_lea.hbm %s8, %s956
          %s958 = sshll.u32 %s947, 4
          %s959 = int_to_ptr.vmem [resolvable:$true] %s958
          %s960 = sshll.u32 %s957, 4
          %s961 = int_to_ptr.hbm [resolvable:$true] %s960
          %966 = dma.vmem_to_hbm [thread:$0]  %s959, 512, %s961, %s944, 128, 128, 8
        $region72: #{self_attention_block.5} parent=51 // pred_fallthru
          _
      $region52: #{self_attention_block.5} parent=5 // pred_fallthru
        _
      %p967 = scmp.le.s32.totalorder 2, %s19
      // Predicated region
      $region73: #{self_attention_block.5} parent=5 // pred_check
        %p968 = pneg %p967
      $region74: #{self_attention_block.5} parent=5 // pred_check_branch
        %970 = sbr.rel (%p968) target = $region76
      $region75: #{self_attention_block.5} parent=5 // pred_region
        %s971 = ssub.s32 %s19, 2
        // Predicated region
        $region77: #{self_attention_block.5} parent=75 // pred_check
          %p972 = pneg %p259
        $region78: #{self_attention_block.5} parent=75 // pred_check_branch
          %974 = sbr.rel (%p972) target = $region80
        $region79: #{self_attention_block.5} parent=75 // pred_region
          %s975 = sand.u32 %s244, 1
          %s976 = scalar_lea.sflag [#allocation8], %s975
          %s977 = sand.u32 %s244, 1
          %s978 = smul.addr %s977, 32
          %s979 = scalar_lea.vmem [#allocation11], %s978
          %981 = dma.done %s976, 512
        $region80: #{self_attention_block.5} parent=75 // pred_fallthru
          _
      $region76: #{self_attention_block.5} parent=5 // pred_fallthru
        _
    $region6: #{self_attention_block.5} parent=1 // loop_footer
      %s23 = sadd.s32 1, %s19
    $region7: #{self_attention_block.5} parent=1 // loop_footer_branch
      %18 = sbr.rel target = $region3
    $region8: #{self_attention_block.5} parent=1 // loop_exit
      _
    %982 = vsyncpa [#allocation7], 1
    %s983 = scalar_lea.sflag [#allocation7], 1
    %984 = vsyncpa %s983, 1
    %985 = vsyncpa [#allocation10], 1
    %986 = vsyncpa [#allocation8], 1
    %s987 = scalar_lea.sflag [#allocation8], 1
    %988 = vsyncpa %s987, 1

</llo_original>
